<compile_context>
chip_gen: v5e
topology: v5e:2x2
jax: 0.10.0
libtpu: 0.0.40
codegen_flags: <defaults>
</compile_context>

<pallas_src>
import functools

import jax
import jax.numpy as jnp
from jax.experimental import pallas as pl
from jax.experimental.pallas import tpu as pltpu


# ------------------------------ kernel ------------------------------------- #

def _encoder_layer_kernel(
    text_ref, audio_ref, video_ref, slab_ref,
    a_wq_ref, a_wk_ref, a_wv_ref, a_wp_ref,
    v_wq_ref, v_wk_ref, v_wv_ref, v_wp_ref,
    wfc_ref,
    out_ref,
    *, embed_dim, matmul_dtype,
):
    bt, n_t, td = text_ref.shape
    _, n_a, ad = audio_ref.shape
    _, n_v, vd = video_ref.shape
    e = embed_dim

    def prow(i, d):
        # static (1, d) slice of the packed parameter slab
        return slab_ref[i:i + 1, 0:d]

    def layernorm(x, g, b):
        mean = jnp.mean(x, axis=-1, keepdims=True)
        cent = x - mean
        var = jnp.mean(cent * cent, axis=-1, keepdims=True)
        inv = jax.lax.rsqrt(var + 1e-5)                        # EUP rsqrt
        return cent * inv * g + b

    # Fold the batch tile into the matmul M dimension: all projections below
    # run on (bt * n_rows, d) operands.  (n_t / n_a / n_v multiples of 8 keep
    # these reshapes layout-free.)
    text2 = text_ref[...].reshape(bt * n_t, td)
    audio2 = audio_ref[...].reshape(bt * n_a, ad)
    video2 = video_ref[...].reshape(bt * n_v, vd)

    def cross_attention(m1, m2, n2, wq_ref, wk_ref, wv_ref, wp_ref, base):
        d1 = m1.shape[1]
        d2 = m2.shape[1]
        x1 = layernorm(m1, prow(base + 0, d1), prow(base + 1, d1)).astype(matmul_dtype)
        x2 = layernorm(m2, prow(base + 2, d2), prow(base + 3, d2)).astype(matmul_dtype)
        # `scaling` is pre-folded into wq / bq on the host.
        q = jnp.dot(x1, wq_ref[...], preferred_element_type=jnp.float32) + prow(base + 4, e)
        k = jnp.dot(x2, wk_ref[...], preferred_element_type=jnp.float32) + prow(base + 5, e)
        v = jnp.dot(x2, wv_ref[...], preferred_element_type=jnp.float32) + prow(base + 6, e)

        q3 = q.reshape(bt, n_t, e).astype(matmul_dtype)
        k3 = k.reshape(bt, n2, e).astype(matmul_dtype)
        v3 = v.reshape(bt, n2, e).astype(matmul_dtype)
        # Batched Q @ K^T, contracting the last dims of both (no XLU transpose).
        dots = jax.lax.dot_general(
            q3, k3, dimension_numbers=(((2,), (2,)), ((0,), (0,))),
            preferred_element_type=jnp.float32)                # (bt, n_t, n2) f32
        # numerically-stable softmax, kept in f32
        mx = jnp.max(dots, axis=-1, keepdims=True)
        p = jnp.exp(dots - mx)
        denom = jnp.sum(p, axis=-1, keepdims=True)
        attn = p * pl.reciprocal(denom, approx=False)          # exact reciprocal
        ctx = jax.lax.dot_general(
            attn.astype(matmul_dtype), v3,
            dimension_numbers=(((2,), (1,)), ((0,), (0,))),
            preferred_element_type=jnp.float32)                # (bt, n_t, e)
        ctx2 = ctx.reshape(bt * n_t, e).astype(matmul_dtype)
        return (jnp.dot(ctx2, wp_ref[...], preferred_element_type=jnp.float32)
                + prow(base + 7, d1))                          # (bt*n_t, d1)

    out_a = cross_attention(text2, audio2, n_a, a_wq_ref, a_wk_ref, a_wv_ref, a_wp_ref, 0)
    out_v = cross_attention(text2, video2, n_v, v_wq_ref, v_wk_ref, v_wv_ref, v_wp_ref, 8)

    x = out_a + out_v + text2                                  # residual stream (bt*n_t, td)
    y = layernorm(x, prow(16, td), prow(17, td)).astype(matmul_dtype)
    y = jnp.dot(y, wfc_ref[...], preferred_element_type=jnp.float32) + prow(18, td)
    # TODO(synk): nn.Dropout(p=0.5) treated as identity (inference / eval mode).
    out_ref[...] = (y + x).astype(out_ref.dtype).reshape(bt, n_t, td)


# ------------------------------ wrapper ------------------------------------ #

def _pick_batch_tile(b, n_rows, target_rows=128):
    """Largest divisor of b that (a) keeps the folded matmul M dim <= target_rows
    and (b) keeps >= 2 grid steps so v7x megacore can use both TensorCores."""
    if b <= 1:
        return max(b, 1)
    best = 1
    for t in range(1, b):            # t < b guarantees grid >= 2 for divisors
        if b % t == 0 and t * n_rows <= target_rows:
            best = t
    return best


def crossmodal_encoder_layer(text, audio, video, params, *,
                             batch_tile=None, matmul_dtype=jnp.float32):
    """Fused forward pass of CrossmodalEncoderLayer.  One pallas_call total."""
    b, n_t, td = text.shape
    _, n_a, ad = audio.shape
    _, n_v, vd = video.shape
    e = params["cma_a"]["wq"].shape[0]            # PyTorch Linear weight: (out, in)
    scaling = float(e) ** (-0.5)

    bt = batch_tile if batch_tile is not None else _pick_batch_tile(b, n_t)
    assert b % bt == 0, (b, bt)

    pa, pv = params["cma_a"], params["cma_v"]

    # ---- pack every tiny vector (LN gamma/beta, biases) into one slab ---- #
    width = max(td, ad, vd, e)
    rows = [
        pa["ln1_g"], pa["ln1_b"], pa["ln2_g"], pa["ln2_b"],
        pa["bq"] * scaling, pa["bk"], pa["bv"], pa["bp"],       # rows 0..7  (cma_a)
        pv["ln1_g"], pv["ln1_b"], pv["ln2_g"], pv["ln2_b"],
        pv["bq"] * scaling, pv["bk"], pv["bv"], pv["bp"],       # rows 8..15 (cma_v)
        params["ln_g"], params["ln_b"], params["bfc"],          # rows 16..18
    ]
    n_rows_pad = len(rows) + (-len(rows) % 8)
    slab = jnp.zeros((n_rows_pad, width), jnp.float32)
    for i, r in enumerate(rows):
        slab = slab.at[i, :r.shape[0]].set(r.astype(jnp.float32))

    # ---- weights: transpose once to (in, out); fold scaling into wq ------ #
    w = lambda x: x.T.astype(matmul_dtype)
    weights = (
        (pa["wq"].T * scaling).astype(matmul_dtype), w(pa["wk"]), w(pa["wv"]), w(pa["wp"]),
        (pv["wq"].T * scaling).astype(matmul_dtype), w(pv["wk"]), w(pv["wv"]), w(pv["wp"]),
        w(params["wfc"]),
    )

    def per_batch(n, d):
        return pl.BlockSpec((bt, n, d), lambda i: (i, 0, 0))

    def const2d(a):
        # Constant block index across the grid -> Pallas does not re-fetch it.
        # TODO(synk): single-buffer (pipeline_mode) at production dims on v7x.
        return pl.BlockSpec(a.shape, lambda i: (0, 0))

    in_specs = ([per_batch(n_t, td), per_batch(n_a, ad), per_batch(n_v, vd),
                 const2d(slab)] + [const2d(x) for x in weights])

    kernel = functools.partial(_encoder_layer_kernel,
                               embed_dim=e, matmul_dtype=matmul_dtype)

    return pl.pallas_call(
        kernel,
        out_shape=jax.ShapeDtypeStruct((b, n_t, td), text.dtype),
        grid=(b // bt,),
        in_specs=in_specs,
        out_specs=per_batch(n_t, td),
        compiler_params=pltpu.CompilerParams(
            dimension_semantics=("parallel",),                  # megacore over batch tiles
            vmem_limit_bytes=32 * 1024 * 1024,
        ),
    )(text, audio, video, slab, *weights)


# -------------------------------- main -------------------------------------- #

if __name__ == "__main__":
    key = jax.random.PRNGKey(0)
    b = 8                                   # folds to batch_tile=4 -> grid=(2,)
    n_t, n_a, n_v = 8, 16, 8                # multiples of 8 keep in-kernel reshapes free
    text_dim, audio_dim, video_dim, embed_dim = 32, 24, 40, 64

    keys = iter(jax.random.split(key, 40))

    def nrm(shape, s=0.1):
        return jax.random.normal(next(keys), shape, jnp.float32) * s

    text = jax.random.normal(next(keys), (b, n_t, text_dim), jnp.float32)
    audio = jax.random.normal(next(keys), (b, n_a, audio_dim), jnp.float32)
    video = jax.random.normal(next(keys), (b, n_v, video_dim), jnp.float32)

    def make_cma(d1, d2, e):
        return dict(
            ln1_g=1.0 + nrm((d1,)), ln1_b=nrm((d1,)),
            ln2_g=1.0 + nrm((d2,)), ln2_b=nrm((d2,)),
            wq=nrm((e, d1)), bq=nrm((e,)),
            wk=nrm((e, d2)), bk=nrm((e,)),
            wv=nrm((e, d2)), bv=nrm((e,)),
            wp=nrm((d1, e)), bp=nrm((d1,)),
        )

    params = dict(
        cma_a=make_cma(text_dim, audio_dim, embed_dim),
        cma_v=make_cma(text_dim, video_dim, embed_dim),
        ln_g=1.0 + nrm((text_dim,)), ln_b=nrm((text_dim,)),
        wfc=nrm((text_dim, text_dim)), bfc=nrm((text_dim,)),
    )

    out = crossmodal_encoder_layer(text, audio, video, params)
    out = jax.block_until_ready(out)

    # ---- pure-JAX reference (eval-mode semantics of the PyTorch module) ---- #
    scaling = embed_dim ** (-0.5)

    def ln_ref(x, g, beta):
        mean = x.mean(-1, keepdims=True)
        var = ((x - mean) ** 2).mean(-1, keepdims=True)
        return (x - mean) / jnp.sqrt(var + 1e-5) * g + beta

    def cma_ref(m1, m2, p):
        q = ln_ref(m1, p["ln1_g"], p["ln1_b"]) @ p["wq"].T + p["bq"]
        x2 = ln_ref(m2, p["ln2_g"], p["ln2_b"])
        k = x2 @ p["wk"].T + p["bk"]
        v = x2 @ p["wv"].T + p["bv"]
        attn = jax.nn.softmax(jnp.einsum("bid,bjd->bij", q, k) * scaling, axis=-1)
        ctx = jnp.einsum("bij,bjd->bid", attn, v)
        return ctx @ p["wp"].T + p["bp"]

    x_ref = (cma_ref(text, audio, params["cma_a"])
             + cma_ref(text, video, params["cma_v"]) + text)
    y_ref = ln_ref(x_ref, params["ln_g"], params["ln_b"]) @ params["wfc"].T + params["bfc"]
    expected = y_ref + x_ref

    assert out.shape == (b, n_t, text_dim)
    max_err = float(jnp.max(jnp.abs(out - expected)))
    assert jnp.allclose(out, expected, atol=1e-3, rtol=1e-3), max_err
    print("KERNEL_OK")
</pallas_src>

<mosaic_0001>
module attributes {stable_mosaic.version = 11 : i64} {
  func.func @_encoder_layer_kernel(%arg0: i32, %arg1: memref<4x8x32xf32, #tpu.memory_space<vmem>>, %arg2: memref<4x16x24xf32, #tpu.memory_space<vmem>>, %arg3: memref<4x8x40xf32, #tpu.memory_space<vmem>>, %arg4: memref<24x64xf32, #tpu.memory_space<vmem>>, %arg5: memref<32x64xf32, #tpu.memory_space<vmem>>, %arg6: memref<24x64xf32, #tpu.memory_space<vmem>>, %arg7: memref<24x64xf32, #tpu.memory_space<vmem>>, %arg8: memref<64x32xf32, #tpu.memory_space<vmem>>, %arg9: memref<32x64xf32, #tpu.memory_space<vmem>>, %arg10: memref<40x64xf32, #tpu.memory_space<vmem>>, %arg11: memref<40x64xf32, #tpu.memory_space<vmem>>, %arg12: memref<64x32xf32, #tpu.memory_space<vmem>>, %arg13: memref<32x32xf32, #tpu.memory_space<vmem>>, %arg14: memref<4x8x32xf32, #tpu.memory_space<vmem>>) attributes {dimension_semantics = [#tpu.dimension_semantics<parallel>], iteration_bounds = array<i64: 2>, scalar_prefetch = 0 : i64, scratch_operands = 0 : i64, tpu.core_type = #tpu.core_type<tc>, window_params = [{transform_indices = @transform_0, window_bounds = array<i64: 4, 8, 32>}, {transform_indices = @transform_1, window_bounds = array<i64: 4, 16, 24>}, {transform_indices = @transform_2, window_bounds = array<i64: 4, 8, 40>}, {pipeline_mode = #tpu.pipeline_mode<synchronous>, transform_indices = @transform_3, window_bounds = array<i64: 24, 64>}, {pipeline_mode = #tpu.pipeline_mode<synchronous>, transform_indices = @transform_4, window_bounds = array<i64: 32, 64>}, {pipeline_mode = #tpu.pipeline_mode<synchronous>, transform_indices = @transform_5, window_bounds = array<i64: 24, 64>}, {pipeline_mode = #tpu.pipeline_mode<synchronous>, transform_indices = @transform_6, window_bounds = array<i64: 24, 64>}, {pipeline_mode = #tpu.pipeline_mode<synchronous>, transform_indices = @transform_7, window_bounds = array<i64: 64, 32>}, {pipeline_mode = #tpu.pipeline_mode<synchronous>, transform_indices = @transform_8, window_bounds = array<i64: 32, 64>}, {pipeline_mode = #tpu.pipeline_mode<synchronous>, transform_indices = @transform_9, window_bounds = array<i64: 40, 64>}, {pipeline_mode = #tpu.pipeline_mode<synchronous>, transform_indices = @transform_10, window_bounds = array<i64: 40, 64>}, {pipeline_mode = #tpu.pipeline_mode<synchronous>, transform_indices = @transform_11, window_bounds = array<i64: 64, 32>}, {pipeline_mode = #tpu.pipeline_mode<synchronous>, transform_indices = @transform_12, window_bounds = array<i64: 32, 32>}, {transform_indices = @transform_13, window_bounds = array<i64: 4, 8, 32>}]} {
    %c0 = arith.constant 0 : index
    %c0_0 = arith.constant 0 : index
    %c0_1 = arith.constant 0 : index
    %0 = vector.load %arg1[%c0, %c0_0, %c0_1] : memref<4x8x32xf32, #tpu.memory_space<vmem>>, vector<4x8x32xf32>
    %1 = vector.shape_cast %0 : vector<4x8x32xf32> to vector<32x32xf32>
    %c0_2 = arith.constant 0 : index
    %c0_3 = arith.constant 0 : index
    %c0_4 = arith.constant 0 : index
    %2 = vector.load %arg2[%c0_2, %c0_3, %c0_4] : memref<4x16x24xf32, #tpu.memory_space<vmem>>, vector<4x16x24xf32>
    %3 = vector.shape_cast %2 : vector<4x16x24xf32> to vector<64x24xf32>
    %c0_5 = arith.constant 0 : index
    %c0_6 = arith.constant 0 : index
    %c0_7 = arith.constant 0 : index
    %4 = vector.load %arg3[%c0_5, %c0_6, %c0_7] : memref<4x8x40xf32, #tpu.memory_space<vmem>>, vector<4x8x40xf32>
    %5 = vector.shape_cast %4 : vector<4x8x40xf32> to vector<32x40xf32>
    %c0_8 = arith.constant 0 : index
    %c0_9 = arith.constant 0 : index
    %6 = vector.load %arg4[%c0_8, %c0_9] : memref<24x64xf32, #tpu.memory_space<vmem>>, vector<1x32xf32>
    %c1 = arith.constant 1 : index
    %c0_10 = arith.constant 0 : index
    %7 = vector.load %arg4[%c1, %c0_10] : memref<24x64xf32, #tpu.memory_space<vmem>>, vector<1x32xf32>
    %cst = arith.constant dense<0.000000e+00> : vector<32xf32>
    %8 = vector.multi_reduction <add>, %1, %cst [1] : vector<32x32xf32> to vector<32xf32>
    %9 = vector.shape_cast %8 : vector<32xf32> to vector<32x1xf32>
    %cst_11 = arith.constant 3.200000e+01 : f32
    %10 = vector.broadcast %cst_11 : f32 to vector<32x1xf32>
    %11 = arith.divf %9, %10 : vector<32x1xf32>
    %12 = vector.broadcast %11 : vector<32x1xf32> to vector<32x32xf32>
    %13 = arith.subf %1, %12 : vector<32x32xf32>
    %14 = arith.mulf %13, %13 : vector<32x32xf32>
    %cst_12 = arith.constant dense<0.000000e+00> : vector<32xf32>
    %15 = vector.multi_reduction <add>, %14, %cst_12 [1] : vector<32x32xf32> to vector<32xf32>
    %16 = vector.shape_cast %15 : vector<32xf32> to vector<32x1xf32>
    %cst_13 = arith.constant 3.200000e+01 : f32
    %17 = vector.broadcast %cst_13 : f32 to vector<32x1xf32>
    %18 = arith.divf %16, %17 : vector<32x1xf32>
    %cst_14 = arith.constant 9.99999974E-6 : f32
    %19 = vector.broadcast %cst_14 : f32 to vector<32x1xf32>
    %20 = arith.addf %18, %19 : vector<32x1xf32>
    %21 = math.rsqrt %20 : vector<32x1xf32>
    %22 = vector.broadcast %21 : vector<32x1xf32> to vector<32x32xf32>
    %23 = arith.mulf %13, %22 : vector<32x32xf32>
    %24 = vector.broadcast %6 : vector<1x32xf32> to vector<32x32xf32>
    %25 = arith.mulf %23, %24 : vector<32x32xf32>
    %26 = vector.broadcast %7 : vector<1x32xf32> to vector<32x32xf32>
    %27 = arith.addf %25, %26 : vector<32x32xf32>
    %c2 = arith.constant 2 : index
    %c0_15 = arith.constant 0 : index
    %28 = vector.load %arg4[%c2, %c0_15] : memref<24x64xf32, #tpu.memory_space<vmem>>, vector<1x24xf32>
    %c3 = arith.constant 3 : index
    %c0_16 = arith.constant 0 : index
    %29 = vector.load %arg4[%c3, %c0_16] : memref<24x64xf32, #tpu.memory_space<vmem>>, vector<1x24xf32>
    %cst_17 = arith.constant dense<0.000000e+00> : vector<64xf32>
    %30 = vector.multi_reduction <add>, %3, %cst_17 [1] : vector<64x24xf32> to vector<64xf32>
    %31 = vector.shape_cast %30 : vector<64xf32> to vector<64x1xf32>
    %cst_18 = arith.constant 2.400000e+01 : f32
    %32 = vector.broadcast %cst_18 : f32 to vector<64x1xf32>
    %33 = arith.divf %31, %32 : vector<64x1xf32>
    %34 = vector.broadcast %33 : vector<64x1xf32> to vector<64x24xf32>
    %35 = arith.subf %3, %34 : vector<64x24xf32>
    %36 = arith.mulf %35, %35 : vector<64x24xf32>
    %cst_19 = arith.constant dense<0.000000e+00> : vector<64xf32>
    %37 = vector.multi_reduction <add>, %36, %cst_19 [1] : vector<64x24xf32> to vector<64xf32>
    %38 = vector.shape_cast %37 : vector<64xf32> to vector<64x1xf32>
    %cst_20 = arith.constant 2.400000e+01 : f32
    %39 = vector.broadcast %cst_20 : f32 to vector<64x1xf32>
    %40 = arith.divf %38, %39 : vector<64x1xf32>
    %cst_21 = arith.constant 9.99999974E-6 : f32
    %41 = vector.broadcast %cst_21 : f32 to vector<64x1xf32>
    %42 = arith.addf %40, %41 : vector<64x1xf32>
    %43 = math.rsqrt %42 : vector<64x1xf32>
    %44 = vector.broadcast %43 : vector<64x1xf32> to vector<64x24xf32>
    %45 = arith.mulf %35, %44 : vector<64x24xf32>
    %46 = vector.broadcast %28 : vector<1x24xf32> to vector<64x24xf32>
    %47 = arith.mulf %45, %46 : vector<64x24xf32>
    %48 = vector.broadcast %29 : vector<1x24xf32> to vector<64x24xf32>
    %49 = arith.addf %47, %48 : vector<64x24xf32>
    %c0_22 = arith.constant 0 : index
    %c0_23 = arith.constant 0 : index
    %50 = vector.load %arg5[%c0_22, %c0_23] : memref<32x64xf32, #tpu.memory_space<vmem>>, vector<32x64xf32>
    %cst_24 = arith.constant dense<0.000000e+00> : vector<32x64xf32>
    %51 = tpu.matmul %27, %50, %cst_24 {dimension_numbers = #tpu.dot_dimension_numbers<[1], [0], [0], [1], [0, 0, 1, 1], [], []>} : vector<32x32xf32>, vector<32x64xf32>, vector<32x64xf32> -> vector<32x64xf32>
    %c4 = arith.constant 4 : index
    %c0_25 = arith.constant 0 : index
    %52 = vector.load %arg4[%c4, %c0_25] : memref<24x64xf32, #tpu.memory_space<vmem>>, vector<1x64xf32>
    %53 = vector.broadcast %52 : vector<1x64xf32> to vector<32x64xf32>
    %54 = arith.addf %51, %53 : vector<32x64xf32>
    %c0_26 = arith.constant 0 : index
    %c0_27 = arith.constant 0 : index
    %55 = vector.load %arg6[%c0_26, %c0_27] : memref<24x64xf32, #tpu.memory_space<vmem>>, vector<24x64xf32>
    %cst_28 = arith.constant dense<0.000000e+00> : vector<64x64xf32>
    %56 = tpu.matmul %49, %55, %cst_28 {dimension_numbers = #tpu.dot_dimension_numbers<[1], [0], [0], [1], [0, 0, 1, 1], [], []>} : vector<64x24xf32>, vector<24x64xf32>, vector<64x64xf32> -> vector<64x64xf32>
    %c5 = arith.constant 5 : index
    %c0_29 = arith.constant 0 : index
    %57 = vector.load %arg4[%c5, %c0_29] : memref<24x64xf32, #tpu.memory_space<vmem>>, vector<1x64xf32>
    %58 = vector.broadcast %57 : vector<1x64xf32> to vector<64x64xf32>
    %59 = arith.addf %56, %58 : vector<64x64xf32>
    %c0_30 = arith.constant 0 : index
    %c0_31 = arith.constant 0 : index
    %60 = vector.load %arg7[%c0_30, %c0_31] : memref<24x64xf32, #tpu.memory_space<vmem>>, vector<24x64xf32>
    %cst_32 = arith.constant dense<0.000000e+00> : vector<64x64xf32>
    %61 = tpu.matmul %49, %60, %cst_32 {dimension_numbers = #tpu.dot_dimension_numbers<[1], [0], [0], [1], [0, 0, 1, 1], [], []>} : vector<64x24xf32>, vector<24x64xf32>, vector<64x64xf32> -> vector<64x64xf32>
    %c6 = arith.constant 6 : index
    %c0_33 = arith.constant 0 : index
    %62 = vector.load %arg4[%c6, %c0_33] : memref<24x64xf32, #tpu.memory_space<vmem>>, vector<1x64xf32>
    %63 = vector.broadcast %62 : vector<1x64xf32> to vector<64x64xf32>
    %64 = arith.addf %61, %63 : vector<64x64xf32>
    %65 = vector.shape_cast %54 : vector<32x64xf32> to vector<4x8x64xf32>
    %66 = vector.shape_cast %59 : vector<64x64xf32> to vector<4x16x64xf32>
    %67 = vector.shape_cast %64 : vector<64x64xf32> to vector<4x16x64xf32>
    %cst_34 = arith.constant dense<0.000000e+00> : vector<4x8x16xf32>
    %68 = tpu.matmul %65, %66, %cst_34 {dimension_numbers = #tpu.dot_dimension_numbers<[2], [2], [1], [1], [0, 0, 0, 1, 1, 1], [0], [0]>} : vector<4x8x64xf32>, vector<4x16x64xf32>, vector<4x8x16xf32> -> vector<4x8x16xf32>
    %cst_35 = arith.constant dense<0xFF800000> : vector<4x8xf32>
    %69 = vector.multi_reduction <maximumf>, %68, %cst_35 [2] : vector<4x8x16xf32> to vector<4x8xf32>
    %70 = vector.shape_cast %69 : vector<4x8xf32> to vector<4x8x1xf32>
    %71 = vector.broadcast %70 : vector<4x8x1xf32> to vector<4x8x16xf32>
    %72 = arith.subf %68, %71 : vector<4x8x16xf32>
    %73 = math.exp %72 : vector<4x8x16xf32>
    %cst_36 = arith.constant dense<0.000000e+00> : vector<4x8xf32>
    %74 = vector.multi_reduction <add>, %73, %cst_36 [2] : vector<4x8x16xf32> to vector<4x8xf32>
    %75 = vector.shape_cast %74 : vector<4x8xf32> to vector<4x8x1xf32>
    %76 = tpu.reciprocal %75 : vector<4x8x1xf32> -> vector<4x8x1xf32>
    %77 = vector.broadcast %76 : vector<4x8x1xf32> to vector<4x8x16xf32>
    %78 = arith.mulf %73, %77 : vector<4x8x16xf32>
    %cst_37 = arith.constant dense<0.000000e+00> : vector<4x8x64xf32>
    %79 = tpu.matmul %78, %67, %cst_37 {dimension_numbers = #tpu.dot_dimension_numbers<[2], [1], [1], [2], [0, 0, 0, 1, 1, 2], [0], [0]>} : vector<4x8x16xf32>, vector<4x16x64xf32>, vector<4x8x64xf32> -> vector<4x8x64xf32>
    %80 = vector.shape_cast %79 : vector<4x8x64xf32> to vector<32x64xf32>
    %c0_38 = arith.constant 0 : index
    %c0_39 = arith.constant 0 : index
    %81 = vector.load %arg8[%c0_38, %c0_39] : memref<64x32xf32, #tpu.memory_space<vmem>>, vector<64x32xf32>
    %cst_40 = arith.constant dense<0.000000e+00> : vector<32x32xf32>
    %82 = tpu.matmul %80, %81, %cst_40 {dimension_numbers = #tpu.dot_dimension_numbers<[1], [0], [0], [1], [0, 0, 1, 1], [], []>} : vector<32x64xf32>, vector<64x32xf32>, vector<32x32xf32> -> vector<32x32xf32>
    %c7 = arith.constant 7 : index
    %c0_41 = arith.constant 0 : index
    %83 = vector.load %arg4[%c7, %c0_41] : memref<24x64xf32, #tpu.memory_space<vmem>>, vector<1x32xf32>
    %84 = vector.broadcast %83 : vector<1x32xf32> to vector<32x32xf32>
    %85 = arith.addf %82, %84 : vector<32x32xf32>
    %c8 = arith.constant 8 : index
    %c0_42 = arith.constant 0 : index
    %86 = vector.load %arg4[%c8, %c0_42] : memref<24x64xf32, #tpu.memory_space<vmem>>, vector<1x32xf32>
    %c9 = arith.constant 9 : index
    %c0_43 = arith.constant 0 : index
    %87 = vector.load %arg4[%c9, %c0_43] : memref<24x64xf32, #tpu.memory_space<vmem>>, vector<1x32xf32>
    %cst_44 = arith.constant dense<0.000000e+00> : vector<32xf32>
    %88 = vector.multi_reduction <add>, %1, %cst_44 [1] : vector<32x32xf32> to vector<32xf32>
    %89 = vector.shape_cast %88 : vector<32xf32> to vector<32x1xf32>
    %cst_45 = arith.constant 3.200000e+01 : f32
    %90 = vector.broadcast %cst_45 : f32 to vector<32x1xf32>
    %91 = arith.divf %89, %90 : vector<32x1xf32>
    %92 = vector.broadcast %91 : vector<32x1xf32> to vector<32x32xf32>
    %93 = arith.subf %1, %92 : vector<32x32xf32>
    %94 = arith.mulf %93, %93 : vector<32x32xf32>
    %cst_46 = arith.constant dense<0.000000e+00> : vector<32xf32>
    %95 = vector.multi_reduction <add>, %94, %cst_46 [1] : vector<32x32xf32> to vector<32xf32>
    %96 = vector.shape_cast %95 : vector<32xf32> to vector<32x1xf32>
    %cst_47 = arith.constant 3.200000e+01 : f32
    %97 = vector.broadcast %cst_47 : f32 to vector<32x1xf32>
    %98 = arith.divf %96, %97 : vector<32x1xf32>
    %cst_48 = arith.constant 9.99999974E-6 : f32
    %99 = vector.broadcast %cst_48 : f32 to vector<32x1xf32>
    %100 = arith.addf %98, %99 : vector<32x1xf32>
    %101 = math.rsqrt %100 : vector<32x1xf32>
    %102 = vector.broadcast %101 : vector<32x1xf32> to vector<32x32xf32>
    %103 = arith.mulf %93, %102 : vector<32x32xf32>
    %104 = vector.broadcast %86 : vector<1x32xf32> to vector<32x32xf32>
    %105 = arith.mulf %103, %104 : vector<32x32xf32>
    %106 = vector.broadcast %87 : vector<1x32xf32> to vector<32x32xf32>
    %107 = arith.addf %105, %106 : vector<32x32xf32>
    %c10 = arith.constant 10 : index
    %c0_49 = arith.constant 0 : index
    %108 = vector.load %arg4[%c10, %c0_49] : memref<24x64xf32, #tpu.memory_space<vmem>>, vector<1x40xf32>
    %c11 = arith.constant 11 : index
    %c0_50 = arith.constant 0 : index
    %109 = vector.load %arg4[%c11, %c0_50] : memref<24x64xf32, #tpu.memory_space<vmem>>, vector<1x40xf32>
    %cst_51 = arith.constant dense<0.000000e+00> : vector<32xf32>
    %110 = vector.multi_reduction <add>, %5, %cst_51 [1] : vector<32x40xf32> to vector<32xf32>
    %111 = vector.shape_cast %110 : vector<32xf32> to vector<32x1xf32>
    %cst_52 = arith.constant 4.000000e+01 : f32
    %112 = vector.broadcast %cst_52 : f32 to vector<32x1xf32>
    %113 = arith.divf %111, %112 : vector<32x1xf32>
    %114 = vector.broadcast %113 : vector<32x1xf32> to vector<32x40xf32>
    %115 = arith.subf %5, %114 : vector<32x40xf32>
    %116 = arith.mulf %115, %115 : vector<32x40xf32>
    %cst_53 = arith.constant dense<0.000000e+00> : vector<32xf32>
    %117 = vector.multi_reduction <add>, %116, %cst_53 [1] : vector<32x40xf32> to vector<32xf32>
    %118 = vector.shape_cast %117 : vector<32xf32> to vector<32x1xf32>
    %cst_54 = arith.constant 4.000000e+01 : f32
    %119 = vector.broadcast %cst_54 : f32 to vector<32x1xf32>
    %120 = arith.divf %118, %119 : vector<32x1xf32>
    %cst_55 = arith.constant 9.99999974E-6 : f32
    %121 = vector.broadcast %cst_55 : f32 to vector<32x1xf32>
    %122 = arith.addf %120, %121 : vector<32x1xf32>
    %123 = math.rsqrt %122 : vector<32x1xf32>
    %124 = vector.broadcast %123 : vector<32x1xf32> to vector<32x40xf32>
    %125 = arith.mulf %115, %124 : vector<32x40xf32>
    %126 = vector.broadcast %108 : vector<1x40xf32> to vector<32x40xf32>
    %127 = arith.mulf %125, %126 : vector<32x40xf32>
    %128 = vector.broadcast %109 : vector<1x40xf32> to vector<32x40xf32>
    %129 = arith.addf %127, %128 : vector<32x40xf32>
    %c0_56 = arith.constant 0 : index
    %c0_57 = arith.constant 0 : index
    %130 = vector.load %arg9[%c0_56, %c0_57] : memref<32x64xf32, #tpu.memory_space<vmem>>, vector<32x64xf32>
    %cst_58 = arith.constant dense<0.000000e+00> : vector<32x64xf32>
    %131 = tpu.matmul %107, %130, %cst_58 {dimension_numbers = #tpu.dot_dimension_numbers<[1], [0], [0], [1], [0, 0, 1, 1], [], []>} : vector<32x32xf32>, vector<32x64xf32>, vector<32x64xf32> -> vector<32x64xf32>
    %c12 = arith.constant 12 : index
    %c0_59 = arith.constant 0 : index
    %132 = vector.load %arg4[%c12, %c0_59] : memref<24x64xf32, #tpu.memory_space<vmem>>, vector<1x64xf32>
    %133 = vector.broadcast %132 : vector<1x64xf32> to vector<32x64xf32>
    %134 = arith.addf %131, %133 : vector<32x64xf32>
    %c0_60 = arith.constant 0 : index
    %c0_61 = arith.constant 0 : index
    %135 = vector.load %arg10[%c0_60, %c0_61] : memref<40x64xf32, #tpu.memory_space<vmem>>, vector<40x64xf32>
    %cst_62 = arith.constant dense<0.000000e+00> : vector<32x64xf32>
    %136 = tpu.matmul %129, %135, %cst_62 {dimension_numbers = #tpu.dot_dimension_numbers<[1], [0], [0], [1], [0, 0, 1, 1], [], []>} : vector<32x40xf32>, vector<40x64xf32>, vector<32x64xf32> -> vector<32x64xf32>
    %c13 = arith.constant 13 : index
    %c0_63 = arith.constant 0 : index
    %137 = vector.load %arg4[%c13, %c0_63] : memref<24x64xf32, #tpu.memory_space<vmem>>, vector<1x64xf32>
    %138 = vector.broadcast %137 : vector<1x64xf32> to vector<32x64xf32>
    %139 = arith.addf %136, %138 : vector<32x64xf32>
    %c0_64 = arith.constant 0 : index
    %c0_65 = arith.constant 0 : index
    %140 = vector.load %arg11[%c0_64, %c0_65] : memref<40x64xf32, #tpu.memory_space<vmem>>, vector<40x64xf32>
    %cst_66 = arith.constant dense<0.000000e+00> : vector<32x64xf32>
    %141 = tpu.matmul %129, %140, %cst_66 {dimension_numbers = #tpu.dot_dimension_numbers<[1], [0], [0], [1], [0, 0, 1, 1], [], []>} : vector<32x40xf32>, vector<40x64xf32>, vector<32x64xf32> -> vector<32x64xf32>
    %c14 = arith.constant 14 : index
    %c0_67 = arith.constant 0 : index
    %142 = vector.load %arg4[%c14, %c0_67] : memref<24x64xf32, #tpu.memory_space<vmem>>, vector<1x64xf32>
    %143 = vector.broadcast %142 : vector<1x64xf32> to vector<32x64xf32>
    %144 = arith.addf %141, %143 : vector<32x64xf32>
    %145 = vector.shape_cast %134 : vector<32x64xf32> to vector<4x8x64xf32>
    %146 = vector.shape_cast %139 : vector<32x64xf32> to vector<4x8x64xf32>
    %147 = vector.shape_cast %144 : vector<32x64xf32> to vector<4x8x64xf32>
    %cst_68 = arith.constant dense<0.000000e+00> : vector<4x8x8xf32>
    %148 = tpu.matmul %145, %146, %cst_68 {dimension_numbers = #tpu.dot_dimension_numbers<[2], [2], [1], [1], [0, 0, 0, 1, 1, 1], [0], [0]>} : vector<4x8x64xf32>, vector<4x8x64xf32>, vector<4x8x8xf32> -> vector<4x8x8xf32>
    %cst_69 = arith.constant dense<0xFF800000> : vector<4x8xf32>
    %149 = vector.multi_reduction <maximumf>, %148, %cst_69 [2] : vector<4x8x8xf32> to vector<4x8xf32>
    %150 = vector.shape_cast %149 : vector<4x8xf32> to vector<4x8x1xf32>
    %151 = vector.broadcast %150 : vector<4x8x1xf32> to vector<4x8x8xf32>
    %152 = arith.subf %148, %151 : vector<4x8x8xf32>
    %153 = math.exp %152 : vector<4x8x8xf32>
    %cst_70 = arith.constant dense<0.000000e+00> : vector<4x8xf32>
    %154 = vector.multi_reduction <add>, %153, %cst_70 [2] : vector<4x8x8xf32> to vector<4x8xf32>
    %155 = vector.shape_cast %154 : vector<4x8xf32> to vector<4x8x1xf32>
    %156 = tpu.reciprocal %155 : vector<4x8x1xf32> -> vector<4x8x1xf32>
    %157 = vector.broadcast %156 : vector<4x8x1xf32> to vector<4x8x8xf32>
    %158 = arith.mulf %153, %157 : vector<4x8x8xf32>
    %cst_71 = arith.constant dense<0.000000e+00> : vector<4x8x64xf32>
    %159 = tpu.matmul %158, %147, %cst_71 {dimension_numbers = #tpu.dot_dimension_numbers<[2], [1], [1], [2], [0, 0, 0, 1, 1, 2], [0], [0]>} : vector<4x8x8xf32>, vector<4x8x64xf32>, vector<4x8x64xf32> -> vector<4x8x64xf32>
    %160 = vector.shape_cast %159 : vector<4x8x64xf32> to vector<32x64xf32>
    %c0_72 = arith.constant 0 : index
    %c0_73 = arith.constant 0 : index
    %161 = vector.load %arg12[%c0_72, %c0_73] : memref<64x32xf32, #tpu.memory_space<vmem>>, vector<64x32xf32>
    %cst_74 = arith.constant dense<0.000000e+00> : vector<32x32xf32>
    %162 = tpu.matmul %160, %161, %cst_74 {dimension_numbers = #tpu.dot_dimension_numbers<[1], [0], [0], [1], [0, 0, 1, 1], [], []>} : vector<32x64xf32>, vector<64x32xf32>, vector<32x32xf32> -> vector<32x32xf32>
    %c15 = arith.constant 15 : index
    %c0_75 = arith.constant 0 : index
    %163 = vector.load %arg4[%c15, %c0_75] : memref<24x64xf32, #tpu.memory_space<vmem>>, vector<1x32xf32>
    %164 = vector.broadcast %163 : vector<1x32xf32> to vector<32x32xf32>
    %165 = arith.addf %162, %164 : vector<32x32xf32>
    %166 = arith.addf %85, %165 : vector<32x32xf32>
    %167 = arith.addf %166, %1 : vector<32x32xf32>
    %c16 = arith.constant 16 : index
    %c0_76 = arith.constant 0 : index
    %168 = vector.load %arg4[%c16, %c0_76] : memref<24x64xf32, #tpu.memory_space<vmem>>, vector<1x32xf32>
    %c17 = arith.constant 17 : index
    %c0_77 = arith.constant 0 : index
    %169 = vector.load %arg4[%c17, %c0_77] : memref<24x64xf32, #tpu.memory_space<vmem>>, vector<1x32xf32>
    %cst_78 = arith.constant dense<0.000000e+00> : vector<32xf32>
    %170 = vector.multi_reduction <add>, %167, %cst_78 [1] : vector<32x32xf32> to vector<32xf32>
    %171 = vector.shape_cast %170 : vector<32xf32> to vector<32x1xf32>
    %cst_79 = arith.constant 3.200000e+01 : f32
    %172 = vector.broadcast %cst_79 : f32 to vector<32x1xf32>
    %173 = arith.divf %171, %172 : vector<32x1xf32>
    %174 = vector.broadcast %173 : vector<32x1xf32> to vector<32x32xf32>
    %175 = arith.subf %167, %174 : vector<32x32xf32>
    %176 = arith.mulf %175, %175 : vector<32x32xf32>
    %cst_80 = arith.constant dense<0.000000e+00> : vector<32xf32>
    %177 = vector.multi_reduction <add>, %176, %cst_80 [1] : vector<32x32xf32> to vector<32xf32>
    %178 = vector.shape_cast %177 : vector<32xf32> to vector<32x1xf32>
    %cst_81 = arith.constant 3.200000e+01 : f32
    %179 = vector.broadcast %cst_81 : f32 to vector<32x1xf32>
    %180 = arith.divf %178, %179 : vector<32x1xf32>
    %cst_82 = arith.constant 9.99999974E-6 : f32
    %181 = vector.broadcast %cst_82 : f32 to vector<32x1xf32>
    %182 = arith.addf %180, %181 : vector<32x1xf32>
    %183 = math.rsqrt %182 : vector<32x1xf32>
    %184 = vector.broadcast %183 : vector<32x1xf32> to vector<32x32xf32>
    %185 = arith.mulf %175, %184 : vector<32x32xf32>
    %186 = vector.broadcast %168 : vector<1x32xf32> to vector<32x32xf32>
    %187 = arith.mulf %185, %186 : vector<32x32xf32>
    %188 = vector.broadcast %169 : vector<1x32xf32> to vector<32x32xf32>
    %189 = arith.addf %187, %188 : vector<32x32xf32>
    %c0_83 = arith.constant 0 : index
    %c0_84 = arith.constant 0 : index
    %190 = vector.load %arg13[%c0_83, %c0_84] : memref<32x32xf32, #tpu.memory_space<vmem>>, vector<32x32xf32>
    %cst_85 = arith.constant dense<0.000000e+00> : vector<32x32xf32>
    %191 = tpu.matmul %189, %190, %cst_85 {dimension_numbers = #tpu.dot_dimension_numbers<[1], [0], [0], [1], [0, 0, 1, 1], [], []>} : vector<32x32xf32>, vector<32x32xf32>, vector<32x32xf32> -> vector<32x32xf32>
    %c18 = arith.constant 18 : index
    %c0_86 = arith.constant 0 : index
    %192 = vector.load %arg4[%c18, %c0_86] : memref<24x64xf32, #tpu.memory_space<vmem>>, vector<1x32xf32>
    %193 = vector.broadcast %192 : vector<1x32xf32> to vector<32x32xf32>
    %194 = arith.addf %191, %193 : vector<32x32xf32>
    %195 = arith.addf %194, %167 : vector<32x32xf32>
    %196 = vector.shape_cast %195 : vector<32x32xf32> to vector<4x8x32xf32>
    %c0_87 = arith.constant 0 : index
    %c0_88 = arith.constant 0 : index
    %c0_89 = arith.constant 0 : index
    %197 = vector.load %arg14[%c0_87, %c0_88, %c0_89] : memref<4x8x32xf32, #tpu.memory_space<vmem>>, vector<4x8x32xf32>
    tpu.vector_store %arg14[%c0_87, %c0_88, %c0_89], %196 {strides = array<i32>} : memref<4x8x32xf32, #tpu.memory_space<vmem>>, vector<4x8x32xf32>,
    return
  }
  func.func @transform_0(%arg0: i32) -> (i32, i32, i32) {
    %c0_i32 = arith.constant 0 : i32
    %c0_i32_0 = arith.constant 0 : i32
    %c0_i32_1 = arith.constant 0 : i32
    return %arg0, %c0_i32, %c0_i32_0 : i32, i32, i32
  }
  func.func @transform_1(%arg0: i32) -> (i32, i32, i32) {
    %c0_i32 = arith.constant 0 : i32
    %c0_i32_0 = arith.constant 0 : i32
    %c0_i32_1 = arith.constant 0 : i32
    return %arg0, %c0_i32, %c0_i32_0 : i32, i32, i32
  }
  func.func @transform_2(%arg0: i32) -> (i32, i32, i32) {
    %c0_i32 = arith.constant 0 : i32
    %c0_i32_0 = arith.constant 0 : i32
    %c0_i32_1 = arith.constant 0 : i32
    return %arg0, %c0_i32, %c0_i32_0 : i32, i32, i32
  }
  func.func @transform_3(%arg0: i32) -> (i32, i32) {
    %c0_i32 = arith.constant 0 : i32
    %c0_i32_0 = arith.constant 0 : i32
    %c0_i32_1 = arith.constant 0 : i32
    return %c0_i32, %c0_i32_0 : i32, i32
  }
  func.func @transform_4(%arg0: i32) -> (i32, i32) {
    %c0_i32 = arith.constant 0 : i32
    %c0_i32_0 = arith.constant 0 : i32
    %c0_i32_1 = arith.constant 0 : i32
    return %c0_i32, %c0_i32_0 : i32, i32
  }
  func.func @transform_5(%arg0: i32) -> (i32, i32) {
    %c0_i32 = arith.constant 0 : i32
    %c0_i32_0 = arith.constant 0 : i32
    %c0_i32_1 = arith.constant 0 : i32
    return %c0_i32, %c0_i32_0 : i32, i32
  }
  func.func @transform_6(%arg0: i32) -> (i32, i32) {
    %c0_i32 = arith.constant 0 : i32
    %c0_i32_0 = arith.constant 0 : i32
    %c0_i32_1 = arith.constant 0 : i32
    return %c0_i32, %c0_i32_0 : i32, i32
  }
  func.func @transform_7(%arg0: i32) -> (i32, i32) {
    %c0_i32 = arith.constant 0 : i32
    %c0_i32_0 = arith.constant 0 : i32
    %c0_i32_1 = arith.constant 0 : i32
    return %c0_i32, %c0_i32_0 : i32, i32
  }
  func.func @transform_8(%arg0: i32) -> (i32, i32) {
    %c0_i32 = arith.constant 0 : i32
    %c0_i32_0 = arith.constant 0 : i32
    %c0_i32_1 = arith.constant 0 : i32
    return %c0_i32, %c0_i32_0 : i32, i32
  }
  func.func @transform_9(%arg0: i32) -> (i32, i32) {
    %c0_i32 = arith.constant 0 : i32
    %c0_i32_0 = arith.constant 0 : i32
    %c0_i32_1 = arith.constant 0 : i32
    return %c0_i32, %c0_i32_0 : i32, i32
  }
  func.func @transform_10(%arg0: i32) -> (i32, i32) {
    %c0_i32 = arith.constant 0 : i32
    %c0_i32_0 = arith.constant 0 : i32
    %c0_i32_1 = arith.constant 0 : i32
    return %c0_i32, %c0_i32_0 : i32, i32
  }
  func.func @transform_11(%arg0: i32) -> (i32, i32) {
    %c0_i32 = arith.constant 0 : i32
    %c0_i32_0 = arith.constant 0 : i32
    %c0_i32_1 = arith.constant 0 : i32
    return %c0_i32, %c0_i32_0 : i32, i32
  }
  func.func @transform_12(%arg0: i32) -> (i32, i32) {
    %c0_i32 = arith.constant 0 : i32
    %c0_i32_0 = arith.constant 0 : i32
    %c0_i32_1 = arith.constant 0 : i32
    return %c0_i32, %c0_i32_0 : i32, i32
  }
  func.func @transform_13(%arg0: i32) -> (i32, i32, i32) {
    %c0_i32 = arith.constant 0 : i32
    %c0_i32_0 = arith.constant 0 : i32
    %c0_i32_1 = arith.constant 0 : i32
    return %arg0, %c0_i32, %c0_i32_0 : i32, i32, i32
  }
}

</mosaic_0001>

<llo_original>
// kernel: tpu_custom_call.1
$region0: #{tpu_custom_call.1}
  #allocation0 [shape = 'u32[]', space=smem, size = 0x4, offset = 0x4, fixed_abs, tag = 'smem constant byte address 0x4 - core index']
  #allocation1 [shape = 'u32[72,128]{1,0:T(1,128)}', space=vmem, size = 0x9000, scoped, tag = 'internal scratch']
  %s0 = inlined_call_operand.hbm [shape: f32[8,8,32], index: 0, kind: input, shape index: {}]
  %s1 = inlined_call_operand.vmem [shape: f32[8,16,24], index: 1, kind: input, shape index: {}]
  %s2 = inlined_call_operand.hbm [shape: f32[8,8,40], index: 2, kind: input, shape index: {}]
  %s3 = inlined_call_operand.hbm [shape: f32[24,64], index: 3, kind: input, shape index: {}]
  %s4 = inlined_call_operand.hbm [shape: f32[32,64], index: 4, kind: input, shape index: {}]
  %s5 = inlined_call_operand.hbm [shape: f32[24,64], index: 5, kind: input, shape index: {}]
  %s6 = inlined_call_operand.hbm [shape: f32[24,64], index: 6, kind: input, shape index: {}]
  %s7 = inlined_call_operand.vmem [shape: f32[64,32], index: 7, kind: input, shape index: {}]
  %s8 = inlined_call_operand.hbm [shape: f32[32,64], index: 8, kind: input, shape index: {}]
  %s9 = inlined_call_operand.vmem [shape: f32[40,64], index: 9, kind: input, shape index: {}]
  %s10 = inlined_call_operand.hbm [shape: f32[40,64], index: 10, kind: input, shape index: {}]
  %s11 = inlined_call_operand.vmem [shape: f32[64,32], index: 11, kind: input, shape index: {}]
  %s12 = inlined_call_operand.hbm [shape: f32[32,32], index: 12, kind: input, shape index: {}]
  %s13 = inlined_call_operand.hbm [shape: f32[8,8,32], index: 13, kind: output, shape index: {}]
  %s14 = sld [smem:[#allocation0]]
  $region121: #{tpu_custom_call.1} parent=0
    _
  %s16 = ssub.s32 1, %s14
  %s17 = scalar_select 0, %s16, %s14
  $region1: #{tpu_custom_call.1} parent=0
    #allocation2 [shape = 'u8[32768]{0}', space=vmem, size = 0x8000, scoped, tag = 'input window, operand 0']
    #allocation3 [shape = 's32[2]{0}', space=sflag, size = 0x8, scoped, tag = 'scoped memory for tpu_custom_call.1']
    #allocation4 [shape = 's32[2]{0}', space=sflag, size = 0x8, scoped, tag = 'scoped memory for tpu_custom_call.1']
    #allocation5 [shape = 'u8[32768]{0}', space=vmem, size = 0x8000, scoped, tag = 'input window, operand 2']
    #allocation6 [shape = 's32[2]{0}', space=sflag, size = 0x8, scoped, tag = 'scoped memory for tpu_custom_call.1']
    #allocation7 [shape = 'u8[12288]{0}', space=vmem, size = 0x3000, scoped, tag = 'input window, operand 3, single buffered']
    #allocation8 [shape = 'u8[16384]{0}', space=vmem, size = 0x4000, scoped, tag = 'input window, operand 4, single buffered']
    #allocation9 [shape = 's32[1]{0}', space=sflag, size = 0x4, scoped, tag = 'scoped memory for tpu_custom_call.1']
    #allocation10 [shape = 'u8[12288]{0}', space=vmem, size = 0x3000, scoped, tag = 'input window, operand 5, single buffered']
    #allocation11 [shape = 'u8[12288]{0}', space=vmem, size = 0x3000, scoped, tag = 'input window, operand 6, single buffered']
    #allocation12 [shape = 's32[1]{0}', space=sflag, size = 0x4, scoped, tag = 'scoped memory for tpu_custom_call.1']
    #allocation13 [shape = 'u8[16384]{0}', space=vmem, size = 0x4000, scoped, tag = 'input window, operand 8, single buffered']
    #allocation14 [shape = 'u8[20480]{0}', space=vmem, size = 0x5000, scoped, tag = 'input window, operand 10, single buffered']
    #allocation15 [shape = 's32[1]{0}', space=sflag, size = 0x4, scoped, tag = 'scoped memory for tpu_custom_call.1']
    #allocation16 [shape = 'u8[16384]{0}', space=vmem, size = 0x4000, scoped, tag = 'input window, operand 12, single buffered']
    #allocation17 [shape = 'u8[32768]{0}', space=vmem, size = 0x8000, scoped, tag = 'output window, operand 0']
    %18 = vsyncpa [#allocation3], 0
    %s19 = scalar_lea.sflag [#allocation3], 1
    %20 = vsyncpa %s19, 0
    %21 = vsyncpa [#allocation6], 0
    %s22 = scalar_lea.sflag [#allocation6], 1
    %23 = vsyncpa %s22, 0
    %24 = vsyncpa [#allocation9], 0
    %25 = vsyncpa [#allocation12], 0
    %26 = vsyncpa [#allocation15], 0
    %27 = vsyncpa [#allocation4], 0
    %s28 = scalar_lea.sflag [#allocation4], 1
    %29 = vsyncpa %s28, 0
    loop: start=0, step=1, limit=4
    $region2: #{tpu_custom_call.1} parent=1 // loop_pre_header
      _
    $region3: #{tpu_custom_call.1} parent=1 // loop_header
      %s31 = sphi 0, %s35
      %p32 = scmp.ge.s32.totalorder %s31, 4
      %s41 = sphi 0, %s43
      %s44 = sphi 0, %s41
      %s45 = sphi 0, %s44
      %s61 = sphi 0, %s45
      %s67 = sphi 0, %s69
      %s70 = sphi 0, %s67
      %s71 = sphi 0, %s70
      %s87 = sphi 0, %s71
      %s93 = sphi 0, %s95
      %s96 = sphi 0, %s93
      %s97 = sphi 0, %s96
      %s113 = sphi 0, %s97
      %s117 = sphi 0, %s117
      %s119 = sphi 0, %s117
      %s120 = sphi 0, %s119
      %s134 = sphi 0, %s120
      %s138 = sphi 0, %s138
      %s140 = sphi 0, %s138
      %s141 = sphi 0, %s140
      %s155 = sphi 0, %s141
      %s159 = sphi 0, %s159
      %s161 = sphi 0, %s159
      %s162 = sphi 0, %s161
      %s176 = sphi 0, %s162
      %s180 = sphi 0, %s180
      %s182 = sphi 0, %s180
      %s183 = sphi 0, %s182
      %s197 = sphi 0, %s183
      %s201 = sphi 0, %s201
      %s203 = sphi 0, %s201
      %s204 = sphi 0, %s203
      %s218 = sphi 0, %s204
      %s222 = sphi 0, %s222
      %s224 = sphi 0, %s222
      %s225 = sphi 0, %s224
      %s239 = sphi 0, %s225
      %s243 = sphi 0, %s243
      %s245 = sphi 0, %s243
      %s246 = sphi 0, %s245
      %s260 = sphi 0, %s246
      %s264 = sphi 0, %s264
      %s266 = sphi 0, %s264
      %s267 = sphi 0, %s266
      %s281 = sphi 0, %s267
      %s285 = sphi 0, %s285
      %s287 = sphi 0, %s285
      %s288 = sphi 0, %s287
      %s302 = sphi 0, %s288
      %s306 = sphi 0, %s306
      %s308 = sphi 0, %s306
      %s309 = sphi 0, %s308
      %s323 = sphi 0, %s309
      %s329 = sphi 0, %s331
      %s332 = sphi 0, %s329
      %s333 = sphi 0, %s332
      %s349 = sphi 0, %s333
    $region4: #{tpu_custom_call.1} parent=1 // loop_header_branch
      %34 = sbr.rel (%p32) target = $region8
    $region5: #{tpu_custom_call.1} parent=1 // loop_body
      %s36 = ssub.s32 %s31, 1
      %s37 = ssub.s32 %s31, 2
      %s38 = sadd.s32 %s31, 1
      %s39 = ssub.s32 %s31, %s38
      %p40 = scmp.eq.s32.totalorder %s39, 0
      %s42 = sadd.s32 %s41, 1
      %s43 = scalar_select %p40, %s41, %s42
      %p46 = pneg %p40
      %p47 = scmp.eq.s32.totalorder %s31, 1
      %p48 = por %p46, %p47
      %p49 = scmp.ne.s32.totalorder %s41, %s44
      %p50 = scmp.eq.s32.totalorder %s31, 0
      %p51 = por %p49, %p50
      %p52 = scmp.ne.s32.totalorder %s41, %s44
      %p53 = scmp.eq.s32.totalorder %s36, 1
      %p54 = por %p52, %p53
      %p55 = scmp.ne.s32.totalorder %s44, %s45
      %p56 = scmp.eq.s32.totalorder %s36, 0
      %p57 = por %p55, %p56
      %p58 = scmp.ne.s32.totalorder %s44, %s45
      %p59 = scmp.eq.s32.totalorder %s37, 1
      %p60 = por %p58, %p59
      %p62 = scmp.ne.s32.totalorder %s45, %s61
      %p63 = scmp.eq.s32.totalorder %s37, 0
      %p64 = por %p62, %p63
      %s65 = ssub.s32 %s31, %s38
      %p66 = scmp.eq.s32.totalorder %s65, 0
      %s68 = sadd.s32 %s67, 1
      %s69 = scalar_select %p66, %s67, %s68
      %p72 = pneg %p66
      %p73 = scmp.eq.s32.totalorder %s31, 1
      %p74 = por %p72, %p73
      %p75 = scmp.ne.s32.totalorder %s67, %s70
      %p76 = scmp.eq.s32.totalorder %s31, 0
      %p77 = por %p75, %p76
      %p78 = scmp.ne.s32.totalorder %s67, %s70
      %p79 = scmp.eq.s32.totalorder %s36, 1
      %p80 = por %p78, %p79
      %p81 = scmp.ne.s32.totalorder %s70, %s71
      %p82 = scmp.eq.s32.totalorder %s36, 0
      %p83 = por %p81, %p82
      %p84 = scmp.ne.s32.totalorder %s70, %s71
      %p85 = scmp.eq.s32.totalorder %s37, 1
      %p86 = por %p84, %p85
      %p88 = scmp.ne.s32.totalorder %s71, %s87
      %p89 = scmp.eq.s32.totalorder %s37, 0
      %p90 = por %p88, %p89
      %s91 = ssub.s32 %s31, %s38
      %p92 = scmp.eq.s32.totalorder %s91, 0
      %s94 = sadd.s32 %s93, 1
      %s95 = scalar_select %p92, %s93, %s94
      %p98 = pneg %p92
      %p99 = scmp.eq.s32.totalorder %s31, 1
      %p100 = por %p98, %p99
      %p101 = scmp.ne.s32.totalorder %s93, %s96
      %p102 = scmp.eq.s32.totalorder %s31, 0
      %p103 = por %p101, %p102
      %p104 = scmp.ne.s32.totalorder %s93, %s96
      %p105 = scmp.eq.s32.totalorder %s36, 1
      %p106 = por %p104, %p105
      %p107 = scmp.ne.s32.totalorder %s96, %s97
      %p108 = scmp.eq.s32.totalorder %s36, 0
      %p109 = por %p107, %p108
      %p110 = scmp.ne.s32.totalorder %s96, %s97
      %p111 = scmp.eq.s32.totalorder %s37, 1
      %p112 = por %p110, %p111
      %p114 = scmp.ne.s32.totalorder %s97, %s113
      %p115 = scmp.eq.s32.totalorder %s37, 0
      %p116 = por %p114, %p115
      %s118 = sadd.s32 %s117, 1
      %p121 = scmp.eq.s32.totalorder %s31, 1
      %p122 = scmp.ne.s32.totalorder %s117, %s119
      %p123 = scmp.eq.s32.totalorder %s31, 0
      %p124 = por %p122, %p123
      %p125 = scmp.ne.s32.totalorder %s117, %s119
      %p126 = scmp.eq.s32.totalorder %s36, 1
      %p127 = por %p125, %p126
      %p128 = scmp.ne.s32.totalorder %s119, %s120
      %p129 = scmp.eq.s32.totalorder %s36, 0
      %p130 = por %p128, %p129
      %p131 = scmp.ne.s32.totalorder %s119, %s120
      %p132 = scmp.eq.s32.totalorder %s37, 1
      %p133 = por %p131, %p132
      %p135 = scmp.ne.s32.totalorder %s120, %s134
      %p136 = scmp.eq.s32.totalorder %s37, 0
      %p137 = por %p135, %p136
      %s139 = sadd.s32 %s138, 1
      %p142 = scmp.eq.s32.totalorder %s31, 1
      %p143 = scmp.ne.s32.totalorder %s138, %s140
      %p144 = scmp.eq.s32.totalorder %s31, 0
      %p145 = por %p143, %p144
      %p146 = scmp.ne.s32.totalorder %s138, %s140
      %p147 = scmp.eq.s32.totalorder %s36, 1
      %p148 = por %p146, %p147
      %p149 = scmp.ne.s32.totalorder %s140, %s141
      %p150 = scmp.eq.s32.totalorder %s36, 0
      %p151 = por %p149, %p150
      %p152 = scmp.ne.s32.totalorder %s140, %s141
      %p153 = scmp.eq.s32.totalorder %s37, 1
      %p154 = por %p152, %p153
      %p156 = scmp.ne.s32.totalorder %s141, %s155
      %p157 = scmp.eq.s32.totalorder %s37, 0
      %p158 = por %p156, %p157
      %s160 = sadd.s32 %s159, 1
      %p163 = scmp.eq.s32.totalorder %s31, 1
      %p164 = scmp.ne.s32.totalorder %s159, %s161
      %p165 = scmp.eq.s32.totalorder %s31, 0
      %p166 = por %p164, %p165
      %p167 = scmp.ne.s32.totalorder %s159, %s161
      %p168 = scmp.eq.s32.totalorder %s36, 1
      %p169 = por %p167, %p168
      %p170 = scmp.ne.s32.totalorder %s161, %s162
      %p171 = scmp.eq.s32.totalorder %s36, 0
      %p172 = por %p170, %p171
      %p173 = scmp.ne.s32.totalorder %s161, %s162
      %p174 = scmp.eq.s32.totalorder %s37, 1
      %p175 = por %p173, %p174
      %p177 = scmp.ne.s32.totalorder %s162, %s176
      %p178 = scmp.eq.s32.totalorder %s37, 0
      %p179 = por %p177, %p178
      %s181 = sadd.s32 %s180, 1
      %p184 = scmp.eq.s32.totalorder %s31, 1
      %p185 = scmp.ne.s32.totalorder %s180, %s182
      %p186 = scmp.eq.s32.totalorder %s31, 0
      %p187 = por %p185, %p186
      %p188 = scmp.ne.s32.totalorder %s180, %s182
      %p189 = scmp.eq.s32.totalorder %s36, 1
      %p190 = por %p188, %p189
      %p191 = scmp.ne.s32.totalorder %s182, %s183
      %p192 = scmp.eq.s32.totalorder %s36, 0
      %p193 = por %p191, %p192
      %p194 = scmp.ne.s32.totalorder %s182, %s183
      %p195 = scmp.eq.s32.totalorder %s37, 1
      %p196 = por %p194, %p195
      %p198 = scmp.ne.s32.totalorder %s183, %s197
      %p199 = scmp.eq.s32.totalorder %s37, 0
      %p200 = por %p198, %p199
      %s202 = sadd.s32 %s201, 1
      %p205 = scmp.eq.s32.totalorder %s31, 1
      %p206 = scmp.ne.s32.totalorder %s201, %s203
      %p207 = scmp.eq.s32.totalorder %s31, 0
      %p208 = por %p206, %p207
      %p209 = scmp.ne.s32.totalorder %s201, %s203
      %p210 = scmp.eq.s32.totalorder %s36, 1
      %p211 = por %p209, %p210
      %p212 = scmp.ne.s32.totalorder %s203, %s204
      %p213 = scmp.eq.s32.totalorder %s36, 0
      %p214 = por %p212, %p213
      %p215 = scmp.ne.s32.totalorder %s203, %s204
      %p216 = scmp.eq.s32.totalorder %s37, 1
      %p217 = por %p215, %p216
      %p219 = scmp.ne.s32.totalorder %s204, %s218
      %p220 = scmp.eq.s32.totalorder %s37, 0
      %p221 = por %p219, %p220
      %s223 = sadd.s32 %s222, 1
      %p226 = scmp.eq.s32.totalorder %s31, 1
      %p227 = scmp.ne.s32.totalorder %s222, %s224
      %p228 = scmp.eq.s32.totalorder %s31, 0
      %p229 = por %p227, %p228
      %p230 = scmp.ne.s32.totalorder %s222, %s224
      %p231 = scmp.eq.s32.totalorder %s36, 1
      %p232 = por %p230, %p231
      %p233 = scmp.ne.s32.totalorder %s224, %s225
      %p234 = scmp.eq.s32.totalorder %s36, 0
      %p235 = por %p233, %p234
      %p236 = scmp.ne.s32.totalorder %s224, %s225
      %p237 = scmp.eq.s32.totalorder %s37, 1
      %p238 = por %p236, %p237
      %p240 = scmp.ne.s32.totalorder %s225, %s239
      %p241 = scmp.eq.s32.totalorder %s37, 0
      %p242 = por %p240, %p241
      %s244 = sadd.s32 %s243, 1
      %p247 = scmp.eq.s32.totalorder %s31, 1
      %p248 = scmp.ne.s32.totalorder %s243, %s245
      %p249 = scmp.eq.s32.totalorder %s31, 0
      %p250 = por %p248, %p249
      %p251 = scmp.ne.s32.totalorder %s243, %s245
      %p252 = scmp.eq.s32.totalorder %s36, 1
      %p253 = por %p251, %p252
      %p254 = scmp.ne.s32.totalorder %s245, %s246
      %p255 = scmp.eq.s32.totalorder %s36, 0
      %p256 = por %p254, %p255
      %p257 = scmp.ne.s32.totalorder %s245, %s246
      %p258 = scmp.eq.s32.totalorder %s37, 1
      %p259 = por %p257, %p258
      %p261 = scmp.ne.s32.totalorder %s246, %s260
      %p262 = scmp.eq.s32.totalorder %s37, 0
      %p263 = por %p261, %p262
      %s265 = sadd.s32 %s264, 1
      %p268 = scmp.eq.s32.totalorder %s31, 1
      %p269 = scmp.ne.s32.totalorder %s264, %s266
      %p270 = scmp.eq.s32.totalorder %s31, 0
      %p271 = por %p269, %p270
      %p272 = scmp.ne.s32.totalorder %s264, %s266
      %p273 = scmp.eq.s32.totalorder %s36, 1
      %p274 = por %p272, %p273
      %p275 = scmp.ne.s32.totalorder %s266, %s267
      %p276 = scmp.eq.s32.totalorder %s36, 0
      %p277 = por %p275, %p276
      %p278 = scmp.ne.s32.totalorder %s266, %s267
      %p279 = scmp.eq.s32.totalorder %s37, 1
      %p280 = por %p278, %p279
      %p282 = scmp.ne.s32.totalorder %s267, %s281
      %p283 = scmp.eq.s32.totalorder %s37, 0
      %p284 = por %p282, %p283
      %s286 = sadd.s32 %s285, 1
      %p289 = scmp.eq.s32.totalorder %s31, 1
      %p290 = scmp.ne.s32.totalorder %s285, %s287
      %p291 = scmp.eq.s32.totalorder %s31, 0
      %p292 = por %p290, %p291
      %p293 = scmp.ne.s32.totalorder %s285, %s287
      %p294 = scmp.eq.s32.totalorder %s36, 1
      %p295 = por %p293, %p294
      %p296 = scmp.ne.s32.totalorder %s287, %s288
      %p297 = scmp.eq.s32.totalorder %s36, 0
      %p298 = por %p296, %p297
      %p299 = scmp.ne.s32.totalorder %s287, %s288
      %p300 = scmp.eq.s32.totalorder %s37, 1
      %p301 = por %p299, %p300
      %p303 = scmp.ne.s32.totalorder %s288, %s302
      %p304 = scmp.eq.s32.totalorder %s37, 0
      %p305 = por %p303, %p304
      %s307 = sadd.s32 %s306, 1
      %p310 = scmp.eq.s32.totalorder %s31, 1
      %p311 = scmp.ne.s32.totalorder %s306, %s308
      %p312 = scmp.eq.s32.totalorder %s31, 0
      %p313 = por %p311, %p312
      %p314 = scmp.ne.s32.totalorder %s306, %s308
      %p315 = scmp.eq.s32.totalorder %s36, 1
      %p316 = por %p314, %p315
      %p317 = scmp.ne.s32.totalorder %s308, %s309
      %p318 = scmp.eq.s32.totalorder %s36, 0
      %p319 = por %p317, %p318
      %p320 = scmp.ne.s32.totalorder %s308, %s309
      %p321 = scmp.eq.s32.totalorder %s37, 1
      %p322 = por %p320, %p321
      %p324 = scmp.ne.s32.totalorder %s309, %s323
      %p325 = scmp.eq.s32.totalorder %s37, 0
      %p326 = por %p324, %p325
      %s327 = ssub.s32 %s31, %s38
      %p328 = scmp.eq.s32.totalorder %s327, 0
      %s330 = sadd.s32 %s329, 1
      %s331 = scalar_select %p328, %s329, %s330
      %p334 = pneg %p328
      %p335 = scmp.eq.s32.totalorder %s31, 1
      %p336 = por %p334, %p335
      %p337 = scmp.ne.s32.totalorder %s329, %s332
      %p338 = scmp.eq.s32.totalorder %s31, 0
      %p339 = por %p337, %p338
      %p340 = scmp.ne.s32.totalorder %s329, %s332
      %p341 = scmp.eq.s32.totalorder %s36, 1
      %p342 = por %p340, %p341
      %p343 = scmp.ne.s32.totalorder %s332, %s333
      %p344 = scmp.eq.s32.totalorder %s36, 0
      %p345 = por %p343, %p344
      %p346 = scmp.ne.s32.totalorder %s332, %s333
      %p347 = scmp.eq.s32.totalorder %s37, 1
      %p348 = por %p346, %p347
      %p350 = scmp.ne.s32.totalorder %s333, %s349
      %p351 = scmp.eq.s32.totalorder %s37, 0
      %p352 = por %p350, %p351
      %p353 = scmp.le.s32.totalorder 1, %s31
      %p354 = scmp.lt.s32.totalorder %s31, 3
      %p355 = pnand %p353, %p354
      %p356 = pneg %p355
      // Predicated region
      $region9: #{tpu_custom_call.1} parent=5 // pred_check
        _
      $region10: #{tpu_custom_call.1} parent=5 // pred_check_branch
        %358 = sbr.rel (%p355) target = $region12
      $region11: #{tpu_custom_call.1} parent=5 // pred_region
        %s359 = ssub.s32 %s31, 1
        // Predicated region
        $region13: #{tpu_custom_call.1} parent=11 // pred_check
          %p360 = pneg %p130
        $region14: #{tpu_custom_call.1} parent=11 // pred_check_branch
          %362 = sbr.rel (%p360) target = $region16
        $region15: #{tpu_custom_call.1} parent=11 // pred_region
          %364 = vsyncadd [#allocation6], 0
          %s365 = sshll.u32 %s3, 4
          %s366 = int_to_ptr.hbm [resolvable:$true] %s365
          %s367 = sshll.u32 [#allocation7], 4
          %s368 = int_to_ptr.vmem [resolvable:$true] %s367
          %373 = dma.hbm_to_vmem [thread:$0]  %s366, 384, %s368, [#allocation6], 128, 128, 8
        $region16: #{tpu_custom_call.1} parent=11 // pred_fallthru
          _
        // Predicated region
        $region17: #{tpu_custom_call.1} parent=11 // pred_check
          %p374 = pneg %p151
        $region18: #{tpu_custom_call.1} parent=11 // pred_check_branch
          %376 = sbr.rel (%p374) target = $region20
        $region19: #{tpu_custom_call.1} parent=11 // pred_region
          %378 = vsyncadd [#allocation9], 0
          %s379 = sshll.u32 %s4, 4
          %s380 = int_to_ptr.hbm [resolvable:$true] %s379
          %s381 = sshll.u32 [#allocation8], 4
          %s382 = int_to_ptr.vmem [resolvable:$true] %s381
          %387 = dma.hbm_to_vmem [thread:$0]  %s380, 512, %s382, [#allocation9], 128, 128, 8
        $region20: #{tpu_custom_call.1} parent=11 // pred_fallthru
          _
        // Predicated region
        $region21: #{tpu_custom_call.1} parent=11 // pred_check
          %p388 = pneg %p172
        $region22: #{tpu_custom_call.1} parent=11 // pred_check_branch
          %390 = sbr.rel (%p388) target = $region24
        $region23: #{tpu_custom_call.1} parent=11 // pred_region
          %392 = vsyncadd [#allocation9], 0
          %s393 = sshll.u32 %s5, 4
          %s394 = int_to_ptr.hbm [resolvable:$true] %s393
          %s395 = sshll.u32 [#allocation10], 4
          %s396 = int_to_ptr.vmem [resolvable:$true] %s395
          %401 = dma.hbm_to_vmem [thread:$0]  %s394, 384, %s396, [#allocation9], 128, 128, 8
        $region24: #{tpu_custom_call.1} parent=11 // pred_fallthru
          _
        // Predicated region
        $region25: #{tpu_custom_call.1} parent=11 // pred_check
          %p402 = pneg %p193
        $region26: #{tpu_custom_call.1} parent=11 // pred_check_branch
          %404 = sbr.rel (%p402) target = $region28
        $region27: #{tpu_custom_call.1} parent=11 // pred_region
          %406 = vsyncadd [#allocation12], 0
          %s407 = sshll.u32 %s6, 4
          %s408 = int_to_ptr.hbm [resolvable:$true] %s407
          %s409 = sshll.u32 [#allocation11], 4
          %s410 = int_to_ptr.vmem [resolvable:$true] %s409
          %415 = dma.hbm_to_vmem [thread:$0]  %s408, 384, %s410, [#allocation12], 128, 128, 8
        $region28: #{tpu_custom_call.1} parent=11 // pred_fallthru
          _
        // Predicated region
        $region29: #{tpu_custom_call.1} parent=11 // pred_check
          %p416 = pneg %p214
        $region30: #{tpu_custom_call.1} parent=11 // pred_check_branch
          %418 = sbr.rel (%p416) target = $region32
        $region31: #{tpu_custom_call.1} parent=11 // pred_region
          _
        $region32: #{tpu_custom_call.1} parent=11 // pred_fallthru
          _
        // Predicated region
        $region33: #{tpu_custom_call.1} parent=11 // pred_check
          %p419 = pneg %p235
        $region34: #{tpu_custom_call.1} parent=11 // pred_check_branch
          %421 = sbr.rel (%p419) target = $region36
        $region35: #{tpu_custom_call.1} parent=11 // pred_region
          %423 = vsyncadd [#allocation12], 0
          %s424 = sshll.u32 %s8, 4
          %s425 = int_to_ptr.hbm [resolvable:$true] %s424
          %s426 = sshll.u32 [#allocation13], 4
          %s427 = int_to_ptr.vmem [resolvable:$true] %s426
          %432 = dma.hbm_to_vmem [thread:$0]  %s425, 512, %s427, [#allocation12], 128, 128, 8
        $region36: #{tpu_custom_call.1} parent=11 // pred_fallthru
          _
        // Predicated region
        $region37: #{tpu_custom_call.1} parent=11 // pred_check
          %p433 = pneg %p256
        $region38: #{tpu_custom_call.1} parent=11 // pred_check_branch
          %435 = sbr.rel (%p433) target = $region40
        $region39: #{tpu_custom_call.1} parent=11 // pred_region
          _
        $region40: #{tpu_custom_call.1} parent=11 // pred_fallthru
          _
        // Predicated region
        $region41: #{tpu_custom_call.1} parent=11 // pred_check
          %p436 = pneg %p277
        $region42: #{tpu_custom_call.1} parent=11 // pred_check_branch
          %438 = sbr.rel (%p436) target = $region44
        $region43: #{tpu_custom_call.1} parent=11 // pred_region
          %440 = vsyncadd [#allocation15], 0
          %s441 = sshll.u32 %s10, 4
          %s442 = int_to_ptr.hbm [resolvable:$true] %s441
          %s443 = sshll.u32 [#allocation14], 4
          %s444 = int_to_ptr.vmem [resolvable:$true] %s443
          %449 = dma.hbm_to_vmem [thread:$0]  %s442, 640, %s444, [#allocation15], 128, 128, 8
        $region44: #{tpu_custom_call.1} parent=11 // pred_fallthru
          _
        // Predicated region
        $region45: #{tpu_custom_call.1} parent=11 // pred_check
          %p450 = pneg %p298
        $region46: #{tpu_custom_call.1} parent=11 // pred_check_branch
          %452 = sbr.rel (%p450) target = $region48
        $region47: #{tpu_custom_call.1} parent=11 // pred_region
          _
        $region48: #{tpu_custom_call.1} parent=11 // pred_fallthru
          _
        // Predicated region
        $region49: #{tpu_custom_call.1} parent=11 // pred_check
          %p453 = pneg %p319
        $region50: #{tpu_custom_call.1} parent=11 // pred_check_branch
          %455 = sbr.rel (%p453) target = $region52
        $region51: #{tpu_custom_call.1} parent=11 // pred_region
          %457 = vsyncadd [#allocation15], 0
          %s458 = sshll.u32 %s12, 4
          %s459 = int_to_ptr.hbm [resolvable:$true] %s458
          %s460 = sshll.u32 [#allocation16], 4
          %s461 = int_to_ptr.vmem [resolvable:$true] %s460
          %466 = dma.hbm_to_vmem [thread:$0]  %s459, 512, %s461, [#allocation15], 128, 128, 8
        $region52: #{tpu_custom_call.1} parent=11 // pred_fallthru
          _
      $region12: #{tpu_custom_call.1} parent=5 // pred_fallthru
        _
      %p467 = scmp.lt.s32.totalorder %s31, 2
      // Predicated region
      $region53: #{tpu_custom_call.1} parent=5 // pred_check
        %p468 = pneg %p467
      $region54: #{tpu_custom_call.1} parent=5 // pred_check_branch
        %470 = sbr.rel (%p468) target = $region56
      $region55: #{tpu_custom_call.1} parent=5 // pred_region
        // Predicated region
        $region57: #{tpu_custom_call.1} parent=55 // pred_check
          %p471 = pneg %p51
        $region58: #{tpu_custom_call.1} parent=55 // pred_check_branch
          %473 = sbr.rel (%p471) target = $region60
        $region59: #{tpu_custom_call.1} parent=55 // pred_region
          %s474 = sand.u32 %s41, 1
          %s475 = scalar_lea.sflag [#allocation3], %s474
          %s476 = sand.u32 %s41, 1
          %s477 = smul.addr %s476, 32
          %s478 = scalar_lea.vmem [#allocation2], %s477
          %s479 = smul.u32 4, %s31
          %481 = vsyncadd %s475, 0
          %s482 = smul.addr %s479, 8
          %s483 = scalar_lea.hbm %s0, %s482
          %s484 = sshll.u32 %s483, 4
          %s485 = int_to_ptr.hbm [resolvable:$true] %s484
          %s486 = sshll.u32 %s478, 4
          %s487 = int_to_ptr.vmem [resolvable:$true] %s486
          %492 = dma.hbm_to_vmem [thread:$0]  %s485, 512, %s487, %s475, 128, 128, 8
        $region60: #{tpu_custom_call.1} parent=55 // pred_fallthru
          _
        // Predicated region
        $region61: #{tpu_custom_call.1} parent=55 // pred_check
          %p493 = pneg %p77
        $region62: #{tpu_custom_call.1} parent=55 // pred_check_branch
          %495 = sbr.rel (%p493) target = $region64
        $region63: #{tpu_custom_call.1} parent=55 // pred_region
          %s496 = smul.u32 4, %s31
          %p497 = scmp.lt.s32.totalorder %s496, 7
          %s498 = scalar_select %p497, %s496, 7
          %s499 = smul.addr %s498, 2
          %s500 = smul.addr %s499, 8
          %s501 = scalar_lea.vmem %s1, %s500
          %s502 = smul.u32 4, %s31
        $region64: #{tpu_custom_call.1} parent=55 // pred_fallthru
          _
        // Predicated region
        $region65: #{tpu_custom_call.1} parent=55 // pred_check
          %p503 = pneg %p103
        $region66: #{tpu_custom_call.1} parent=55 // pred_check_branch
          %505 = sbr.rel (%p503) target = $region68
        $region67: #{tpu_custom_call.1} parent=55 // pred_region
          %s506 = sand.u32 %s31, 1
          %s507 = scalar_lea.sflag [#allocation6], %s506
          %s508 = sand.u32 %s93, 1
          %s509 = smul.addr %s508, 32
          %s510 = scalar_lea.vmem [#allocation5], %s509
          %s511 = smul.u32 4, %s31
          %513 = vsyncadd %s507, 0
          %s514 = smul.addr %s511, 8
          %s515 = scalar_lea.hbm %s2, %s514
          %s516 = sshll.u32 %s515, 4
          %s517 = int_to_ptr.hbm [resolvable:$true] %s516
          %s518 = sshll.u32 %s510, 4
          %s519 = int_to_ptr.vmem [resolvable:$true] %s518
          %524 = dma.hbm_to_vmem [thread:$0]  %s517, 512, %s519, %s507, 128, 128, 8
        $region68: #{tpu_custom_call.1} parent=55 // pred_fallthru
          _
      $region56: #{tpu_custom_call.1} parent=5 // pred_fallthru
        _
      %p525 = scmp.le.s32.totalorder 1, %s31
      %p526 = scmp.lt.s32.totalorder %s31, 3
      %p527 = pnand %p525, %p526
      %p528 = pneg %p527
      // Predicated region
      $region69: #{tpu_custom_call.1} parent=5 // pred_check
        _
      $region70: #{tpu_custom_call.1} parent=5 // pred_check_branch
        %530 = sbr.rel (%p527) target = $region72
      $region71: #{tpu_custom_call.1} parent=5 // pred_region
        %s531 = ssub.s32 %s31, 1
        %s532 = sand.u32 %s44, 1
        %s533 = scalar_lea.sflag [#allocation3], %s532
        %s534 = sand.u32 %s44, 1
        %s535 = smul.addr %s534, 32
        %s536 = scalar_lea.vmem [#allocation2], %s535
        // Predicated region
        $region73: #{tpu_custom_call.1} parent=71 // pred_check
          %p537 = pneg %p57
        $region74: #{tpu_custom_call.1} parent=71 // pred_check_branch
          %539 = sbr.rel (%p537) target = $region76
        $region75: #{tpu_custom_call.1} parent=71 // pred_region
          %541 = dma.done %s533, 512
        $region76: #{tpu_custom_call.1} parent=71 // pred_fallthru
          _
        %s542 = sand.u32 %s36, 1
        %s543 = scalar_lea.sflag [#allocation6], %s542
        %s544 = sand.u32 %s96, 1
        %s545 = smul.addr %s544, 32
        %s546 = scalar_lea.vmem [#allocation5], %s545
        // Predicated region
        $region77: #{tpu_custom_call.1} parent=71 // pred_check
          %p547 = pneg %p109
        $region78: #{tpu_custom_call.1} parent=71 // pred_check_branch
          %549 = sbr.rel (%p547) target = $region80
        $region79: #{tpu_custom_call.1} parent=71 // pred_region
          %551 = dma.done %s543, 512
        $region80: #{tpu_custom_call.1} parent=71 // pred_fallthru
          _
        // Predicated region
        $region81: #{tpu_custom_call.1} parent=71 // pred_check
          %p552 = pneg %p130
        $region82: #{tpu_custom_call.1} parent=71 // pred_check_branch
          %554 = sbr.rel (%p552) target = $region84
        $region83: #{tpu_custom_call.1} parent=71 // pred_region
          %556 = dma.done [#allocation6], 384
        $region84: #{tpu_custom_call.1} parent=71 // pred_fallthru
          _
        // Predicated region
        $region85: #{tpu_custom_call.1} parent=71 // pred_check
          %p557 = pneg %p151
        $region86: #{tpu_custom_call.1} parent=71 // pred_check_branch
          %559 = sbr.rel (%p557) target = $region88
        $region87: #{tpu_custom_call.1} parent=71 // pred_region
          %561 = dma.done [#allocation9], 512
        $region88: #{tpu_custom_call.1} parent=71 // pred_fallthru
          _
        // Predicated region
        $region89: #{tpu_custom_call.1} parent=71 // pred_check
          %p562 = pneg %p172
        $region90: #{tpu_custom_call.1} parent=71 // pred_check_branch
          %564 = sbr.rel (%p562) target = $region92
        $region91: #{tpu_custom_call.1} parent=71 // pred_region
          %566 = dma.done [#allocation9], 384
        $region92: #{tpu_custom_call.1} parent=71 // pred_fallthru
          _
        // Predicated region
        $region93: #{tpu_custom_call.1} parent=71 // pred_check
          %p567 = pneg %p193
        $region94: #{tpu_custom_call.1} parent=71 // pred_check_branch
          %569 = sbr.rel (%p567) target = $region96
        $region95: #{tpu_custom_call.1} parent=71 // pred_region
          %571 = dma.done [#allocation12], 384
        $region96: #{tpu_custom_call.1} parent=71 // pred_fallthru
          _
        // Predicated region
        $region97: #{tpu_custom_call.1} parent=71 // pred_check
          %p572 = pneg %p235
        $region98: #{tpu_custom_call.1} parent=71 // pred_check_branch
          %574 = sbr.rel (%p572) target = $region100
        $region99: #{tpu_custom_call.1} parent=71 // pred_region
          %576 = dma.done [#allocation12], 512
        $region100: #{tpu_custom_call.1} parent=71 // pred_fallthru
          _
        // Predicated region
        $region101: #{tpu_custom_call.1} parent=71 // pred_check
          %p577 = pneg %p277
        $region102: #{tpu_custom_call.1} parent=71 // pred_check_branch
          %579 = sbr.rel (%p577) target = $region104
        $region103: #{tpu_custom_call.1} parent=71 // pred_region
          %581 = dma.done [#allocation15], 640
        $region104: #{tpu_custom_call.1} parent=71 // pred_fallthru
          _
        // Predicated region
        $region105: #{tpu_custom_call.1} parent=71 // pred_check
          %p582 = pneg %p319
        $region106: #{tpu_custom_call.1} parent=71 // pred_check_branch
          %584 = sbr.rel (%p582) target = $region108
        $region107: #{tpu_custom_call.1} parent=71 // pred_region
          %586 = dma.done [#allocation15], 512
        $region108: #{tpu_custom_call.1} parent=71 // pred_fallthru
          _
        %s587 = sand.u32 %s44, 1
        %s588 = scalar_lea.sflag [#allocation3], %s587
        %s589 = sand.u32 %s44, 1
        %s590 = smul.addr %s589, 32
        %s591 = scalar_lea.vmem [#allocation2], %s590
        %p592 = pneg %p57
        %p593 = pneg %p54
        %s594 = smul.u32 4, %s36
        %p595 = scmp.lt.s32.totalorder %s594, 7
        %s596 = scalar_select %p595, %s594, 7
        %s597 = smul.addr %s596, 2
        %s598 = smul.addr %s597, 8
        %s599 = scalar_lea.vmem %s1, %s598
        %p600 = pneg %p83
        %p601 = pneg %p80
        %s602 = sand.u32 %s36, 1
        %s603 = scalar_lea.sflag [#allocation6], %s602
        %s604 = sand.u32 %s96, 1
        %s605 = smul.addr %s604, 32
        %s606 = scalar_lea.vmem [#allocation5], %s605
        %p607 = pneg %p109
        %p608 = pneg %p106
        %p609 = pneg %p130
        %p610 = pneg %p127
        %p611 = pneg %p151
        %p612 = pneg %p148
        %p613 = pneg %p172
        %p614 = pneg %p169
        %p615 = pneg %p193
        %p616 = pneg %p190
        %p617 = pneg %p214
        %p618 = pneg %p211
        %p619 = pneg %p235
        %p620 = pneg %p232
        %p621 = pneg %p256
        %p622 = pneg %p253
        %p623 = pneg %p277
        %p624 = pneg %p274
        %p625 = pneg %p298
        %p626 = pneg %p295
        %p627 = pneg %p319
        %p628 = pneg %p316
        %p629 = pneg %p345
        %p630 = pneg %p342
        %s631 = sand.u32 %s332, 1
        %s632 = scalar_lea.sflag [#allocation4], %s631
        %s633 = sand.u32 %s332, 1
        %s634 = smul.addr %s633, 32
        %s635 = scalar_lea.vmem [#allocation17], %s634
        %s636 = smul.u32 4, %s36
        %s637 = smul.u32 4, %s36
        %p638 = scmp.lt.s32.totalorder %s637, 7
        %s639 = scalar_select %p638, %s637, 7
        %s640 = smul.addr %s639, 2
        %s641 = smul.addr %s640, 8
        %s642 = scalar_lea.vmem %s1, %s641
        %s643 = smul.u32 4, %s36
        %s644 = smul.u32 4, %s36
        %s645 = smul.u32 4, %s36
        %v646 = vld [vmem:[%s536] sm:$0xff]
        %v647 = vld [vmem:[%s536 + $0x8] sm:$0xff]
        %v648 = vld [vmem:[%s536 + $0x10] sm:$0xff]
        %v649 = vld [vmem:[%s536 + $0x18] sm:$0xff]
        %v650 = vld [vmem:[%s642] sm:$0xff]
        %v651 = vld [vmem:[%s642 + $0x8] sm:$0xff]
        %v652 = vld [vmem:[%s642 + $0x10] sm:$0xff]
        %v653 = vld [vmem:[%s642 + $0x18] sm:$0xff]
        %v654 = vld [vmem:[%s642 + $0x20] sm:$0xff]
        %v655 = vld [vmem:[%s642 + $0x28] sm:$0xff]
        %v656 = vld [vmem:[%s642 + $0x30] sm:$0xff]
        %v657 = vld [vmem:[%s642 + $0x38] sm:$0xff]
        %v658 = vld [vmem:[%s546] sm:$0xff]
        %v659 = vld [vmem:[%s546 + $0x8] sm:$0xff]
        %v660 = vld [vmem:[%s546 + $0x10] sm:$0xff]
        %v661 = vld [vmem:[%s546 + $0x18] sm:$0xff]
        %v662 = vld [vmem:[#allocation7] sm:$0x1]
        %v663 = vld [vmem:[#allocation7 + $0x1] sm:$0x1]
        %vm664 = vcmask 261120
        %v665 = vsel %vm664, %v646, 0.0
        %666 = vadd.xlane.f32.xlu0 %v665
        %v667 = vpop.xlane.xlu0 %666
        %v668 = vsel %vm664, %v647, 0.0
        %669 = vadd.xlane.f32.xlu0 %v668
        %v670 = vpop.xlane.xlu0 %669
        %v671 = vsel %vm664, %v648, 0.0
        %672 = vadd.xlane.f32.xlu0 %v671
        %v673 = vpop.xlane.xlu0 %672
        %v674 = vsel %vm664, %v649, 0.0
        %675 = vadd.xlane.f32.xlu0 %v674
        %v676 = vpop.xlane.xlu0 %675
        %v677 = vrcp.pop 32.0
        %v678 = vmul.f32 32.0, %v677
        %v679 = vsub.f32 1.0, %v678
        %v680 = vmul.f32 %v677, %v679
        %v681 = vadd.f32 %v677, %v680
        %vm682 = vweird.f32 %v677
        %v683 = vsel %vm682, %v677, %v681
        %v684 = vmul.f32 %v667, %v683
        %v685 = vmul.f32 %v670, %v683
        %v686 = vmul.f32 %v673, %v683
        %v687 = vmul.f32 %v676, %v683
        %v688 = vsub.f32 %v646, %v684
        %v689 = vsub.f32 %v647, %v685
        %v690 = vsub.f32 %v648, %v686
        %v691 = vsub.f32 %v649, %v687
        %v692 = vmul.f32 %v688, %v688
        %v693 = vmul.f32 %v689, %v689
        %v694 = vmul.f32 %v690, %v690
        %v695 = vmul.f32 %v691, %v691
        %v696 = vsel %vm664, %v692, 0.0
        %697 = vadd.xlane.f32.xlu0 %v696
        %v698 = vpop.xlane.xlu0 %697
        %v699 = vsel %vm664, %v693, 0.0
        %700 = vadd.xlane.f32.xlu0 %v699
        %v701 = vpop.xlane.xlu0 %700
        %v702 = vsel %vm664, %v694, 0.0
        %703 = vadd.xlane.f32.xlu0 %v702
        %v704 = vpop.xlane.xlu0 %703
        %v705 = vsel %vm664, %v695, 0.0
        %706 = vadd.xlane.f32.xlu0 %v705
        %v707 = vpop.xlane.xlu0 %706
        %v708 = vmul.f32 %v698, %v683
        %v709 = vmul.f32 %v701, %v683
        %v710 = vmul.f32 %v704, %v683
        %v711 = vmul.f32 %v707, %v683
        %v712 = vadd.f32 %v708, 1e-05
        %v713 = vadd.f32 %v709, 1e-05
        %v714 = vadd.f32 %v710, 1e-05
        %v715 = vadd.f32 %v711, 1e-05
        %v716 = vrsqrt.pop %v712
        %v717 = vmul.f32 %v716, %v712
        %v718 = vmul.f32 %v717, %v716
        %v719 = vmul.f32 0.5, %v718
        %v720 = vsub.f32 1.5, %v719
        %v721 = vmul.f32 %v716, %v720
        %vm722 = vweird.f32 %v712
        %vm723 = vweird.f32 %v716
        %vm724 = vmor %vm722, %vm723
        %v725 = vsel %vm724, %v716, %v721
        %v726 = vrsqrt.pop %v713
        %v727 = vmul.f32 %v726, %v713
        %v728 = vmul.f32 %v727, %v726
        %v729 = vmul.f32 0.5, %v728
        %v730 = vsub.f32 1.5, %v729
        %v731 = vmul.f32 %v726, %v730
        %vm732 = vweird.f32 %v713
        %vm733 = vweird.f32 %v726
        %vm734 = vmor %vm732, %vm733
        %v735 = vsel %vm734, %v726, %v731
        %v736 = vrsqrt.pop %v714
        %v737 = vmul.f32 %v736, %v714
        %v738 = vmul.f32 %v737, %v736
        %v739 = vmul.f32 0.5, %v738
        %v740 = vsub.f32 1.5, %v739
        %v741 = vmul.f32 %v736, %v740
        %vm742 = vweird.f32 %v714
        %vm743 = vweird.f32 %v736
        %vm744 = vmor %vm742, %vm743
        %v745 = vsel %vm744, %v736, %v741
        %v746 = vrsqrt.pop %v715
        %v747 = vmul.f32 %v746, %v715
        %v748 = vmul.f32 %v747, %v746
        %v749 = vmul.f32 0.5, %v748
        %v750 = vsub.f32 1.5, %v749
        %v751 = vmul.f32 %v746, %v750
        %vm752 = vweird.f32 %v715
        %vm753 = vweird.f32 %v746
        %vm754 = vmor %vm752, %vm753
        %v755 = vsel %vm754, %v746, %v751
        %v756 = vmul.f32 %v688, %v725
        %v757 = vmul.f32 %v689, %v735
        %v758 = vmul.f32 %v690, %v745
        %v759 = vmul.f32 %v691, %v755
        %v760 = vperm.slane %v662, 0
        %v761 = vmul.f32 %v756, %v760
        %v762 = vmul.f32 %v757, %v760
        %v763 = vmul.f32 %v758, %v760
        %v764 = vmul.f32 %v759, %v760
        %v765 = vperm.slane %v663, 0
        %v766 = vadd.f32 %v761, %v765
        %v767 = vadd.f32 %v762, %v765
        %v768 = vadd.f32 %v763, %v765
        %v769 = vadd.f32 %v764, %v765
        %v770 = vld [vmem:[#allocation7 + $0x2] sm:$0x1]
        %v771 = vld [vmem:[#allocation7 + $0x3] sm:$0x1]
        %vm772 = vcmask 195584
        %v773 = vsel %vm772, %v650, 0.0
        %774 = vadd.xlane.f32.xlu0 %v773
        %v775 = vpop.xlane.xlu0 %774
        %v776 = vsel %vm772, %v651, 0.0
        %777 = vadd.xlane.f32.xlu0 %v776
        %v778 = vpop.xlane.xlu0 %777
        %v779 = vsel %vm772, %v652, 0.0
        %780 = vadd.xlane.f32.xlu0 %v779
        %v781 = vpop.xlane.xlu0 %780
        %v782 = vsel %vm772, %v653, 0.0
        %783 = vadd.xlane.f32.xlu0 %v782
        %v784 = vpop.xlane.xlu0 %783
        %v785 = vsel %vm772, %v654, 0.0
        %786 = vadd.xlane.f32.xlu0 %v785
        %v787 = vpop.xlane.xlu0 %786
        %v788 = vsel %vm772, %v655, 0.0
        %789 = vadd.xlane.f32.xlu0 %v788
        %v790 = vpop.xlane.xlu0 %789
        %v791 = vsel %vm772, %v656, 0.0
        %792 = vadd.xlane.f32.xlu0 %v791
        %v793 = vpop.xlane.xlu0 %792
        %v794 = vsel %vm772, %v657, 0.0
        %795 = vadd.xlane.f32.xlu0 %v794
        %v796 = vpop.xlane.xlu0 %795
        %v797 = vrcp.pop 24.0
        %v798 = vmul.f32 24.0, %v797
        %v799 = vsub.f32 1.0, %v798
        %v800 = vmul.f32 %v797, %v799
        %v801 = vadd.f32 %v797, %v800
        %vm802 = vweird.f32 %v797
        %v803 = vsel %vm802, %v797, %v801
        %v804 = vmul.f32 %v775, %v803
        %v805 = vmul.f32 %v778, %v803
        %v806 = vmul.f32 %v781, %v803
        %v807 = vmul.f32 %v784, %v803
        %v808 = vmul.f32 %v787, %v803
        %v809 = vmul.f32 %v790, %v803
        %v810 = vmul.f32 %v793, %v803
        %v811 = vmul.f32 %v796, %v803
        %v812 = vsub.f32 %v650, %v804
        %v813 = vsub.f32 %v651, %v805
        %v814 = vsub.f32 %v652, %v806
        %v815 = vsub.f32 %v653, %v807
        %v816 = vsub.f32 %v654, %v808
        %v817 = vsub.f32 %v655, %v809
        %v818 = vsub.f32 %v656, %v810
        %v819 = vsub.f32 %v657, %v811
        %v820 = vmul.f32 %v812, %v812
        %v821 = vmul.f32 %v813, %v813
        %v822 = vmul.f32 %v814, %v814
        %v823 = vmul.f32 %v815, %v815
        %v824 = vmul.f32 %v816, %v816
        %v825 = vmul.f32 %v817, %v817
        %v826 = vmul.f32 %v818, %v818
        %v827 = vmul.f32 %v819, %v819
        %v828 = vsel %vm772, %v820, 0.0
        %829 = vadd.xlane.f32.xlu0 %v828
        %v830 = vpop.xlane.xlu0 %829
        %v831 = vsel %vm772, %v821, 0.0
        %832 = vadd.xlane.f32.xlu0 %v831
        %v833 = vpop.xlane.xlu0 %832
        %v834 = vsel %vm772, %v822, 0.0
        %835 = vadd.xlane.f32.xlu0 %v834
        %v836 = vpop.xlane.xlu0 %835
        %v837 = vsel %vm772, %v823, 0.0
        %838 = vadd.xlane.f32.xlu0 %v837
        %v839 = vpop.xlane.xlu0 %838
        %v840 = vsel %vm772, %v824, 0.0
        %841 = vadd.xlane.f32.xlu0 %v840
        %v842 = vpop.xlane.xlu0 %841
        %v843 = vsel %vm772, %v825, 0.0
        %844 = vadd.xlane.f32.xlu0 %v843
        %v845 = vpop.xlane.xlu0 %844
        %v846 = vsel %vm772, %v826, 0.0
        %847 = vadd.xlane.f32.xlu0 %v846
        %v848 = vpop.xlane.xlu0 %847
        %v849 = vsel %vm772, %v827, 0.0
        %850 = vadd.xlane.f32.xlu0 %v849
        %v851 = vpop.xlane.xlu0 %850
        %v852 = vmul.f32 %v830, %v803
        %v853 = vmul.f32 %v833, %v803
        %v854 = vmul.f32 %v836, %v803
        %v855 = vmul.f32 %v839, %v803
        %v856 = vmul.f32 %v842, %v803
        %v857 = vmul.f32 %v845, %v803
        %v858 = vmul.f32 %v848, %v803
        %v859 = vmul.f32 %v851, %v803
        %v860 = vadd.f32 %v852, 1e-05
        %v861 = vadd.f32 %v853, 1e-05
        %v862 = vadd.f32 %v854, 1e-05
        %v863 = vadd.f32 %v855, 1e-05
        %v864 = vadd.f32 %v856, 1e-05
        %v865 = vadd.f32 %v857, 1e-05
        %v866 = vadd.f32 %v858, 1e-05
        %v867 = vadd.f32 %v859, 1e-05
        %v868 = vrsqrt.pop %v860
        %v869 = vmul.f32 %v868, %v860
        %v870 = vmul.f32 %v869, %v868
        %v871 = vmul.f32 0.5, %v870
        %v872 = vsub.f32 1.5, %v871
        %v873 = vmul.f32 %v868, %v872
        %vm874 = vweird.f32 %v860
        %vm875 = vweird.f32 %v868
        %vm876 = vmor %vm874, %vm875
        %v877 = vsel %vm876, %v868, %v873
        %v878 = vrsqrt.pop %v861
        %v879 = vmul.f32 %v878, %v861
        %v880 = vmul.f32 %v879, %v878
        %v881 = vmul.f32 0.5, %v880
        %v882 = vsub.f32 1.5, %v881
        %v883 = vmul.f32 %v878, %v882
        %vm884 = vweird.f32 %v861
        %vm885 = vweird.f32 %v878
        %vm886 = vmor %vm884, %vm885
        %v887 = vsel %vm886, %v878, %v883
        %v888 = vrsqrt.pop %v862
        %v889 = vmul.f32 %v888, %v862
        %v890 = vmul.f32 %v889, %v888
        %v891 = vmul.f32 0.5, %v890
        %v892 = vsub.f32 1.5, %v891
        %v893 = vmul.f32 %v888, %v892
        %vm894 = vweird.f32 %v862
        %vm895 = vweird.f32 %v888
        %vm896 = vmor %vm894, %vm895
        %v897 = vsel %vm896, %v888, %v893
        %v898 = vrsqrt.pop %v863
        %v899 = vmul.f32 %v898, %v863
        %v900 = vmul.f32 %v899, %v898
        %v901 = vmul.f32 0.5, %v900
        %v902 = vsub.f32 1.5, %v901
        %v903 = vmul.f32 %v898, %v902
        %vm904 = vweird.f32 %v863
        %vm905 = vweird.f32 %v898
        %vm906 = vmor %vm904, %vm905
        %v907 = vsel %vm906, %v898, %v903
        %v908 = vrsqrt.pop %v864
        %v909 = vmul.f32 %v908, %v864
        %v910 = vmul.f32 %v909, %v908
        %v911 = vmul.f32 0.5, %v910
        %v912 = vsub.f32 1.5, %v911
        %v913 = vmul.f32 %v908, %v912
        %vm914 = vweird.f32 %v864
        %vm915 = vweird.f32 %v908
        %vm916 = vmor %vm914, %vm915
        %v917 = vsel %vm916, %v908, %v913
        %v918 = vrsqrt.pop %v865
        %v919 = vmul.f32 %v918, %v865
        %v920 = vmul.f32 %v919, %v918
        %v921 = vmul.f32 0.5, %v920
        %v922 = vsub.f32 1.5, %v921
        %v923 = vmul.f32 %v918, %v922
        %vm924 = vweird.f32 %v865
        %vm925 = vweird.f32 %v918
        %vm926 = vmor %vm924, %vm925
        %v927 = vsel %vm926, %v918, %v923
        %v928 = vrsqrt.pop %v866
        %v929 = vmul.f32 %v928, %v866
        %v930 = vmul.f32 %v929, %v928
        %v931 = vmul.f32 0.5, %v930
        %v932 = vsub.f32 1.5, %v931
        %v933 = vmul.f32 %v928, %v932
        %vm934 = vweird.f32 %v866
        %vm935 = vweird.f32 %v928
        %vm936 = vmor %vm934, %vm935
        %v937 = vsel %vm936, %v928, %v933
        %v938 = vrsqrt.pop %v867
        %v939 = vmul.f32 %v938, %v867
        %v940 = vmul.f32 %v939, %v938
        %v941 = vmul.f32 0.5, %v940
        %v942 = vsub.f32 1.5, %v941
        %v943 = vmul.f32 %v938, %v942
        %vm944 = vweird.f32 %v867
        %vm945 = vweird.f32 %v938
        %vm946 = vmor %vm944, %vm945
        %v947 = vsel %vm946, %v938, %v943
        %v948 = vmul.f32 %v812, %v877
        %v949 = vmul.f32 %v813, %v887
        %v950 = vmul.f32 %v814, %v897
        %v951 = vmul.f32 %v815, %v907
        %v952 = vmul.f32 %v816, %v917
        %v953 = vmul.f32 %v817, %v927
        %v954 = vmul.f32 %v818, %v937
        %v955 = vmul.f32 %v819, %v947
        %v956 = vperm.slane %v770, 0
        %v957 = vmul.f32 %v948, %v956
        %v958 = vmul.f32 %v949, %v956
        %v959 = vmul.f32 %v950, %v956
        %v960 = vmul.f32 %v951, %v956
        %v961 = vmul.f32 %v952, %v956
        %v962 = vmul.f32 %v953, %v956
        %v963 = vmul.f32 %v954, %v956
        %v964 = vmul.f32 %v955, %v956
        %v965 = vperm.slane %v771, 0
        %v966 = vadd.f32 %v957, %v965
        %v967 = vadd.f32 %v958, %v965
        %v968 = vadd.f32 %v959, %v965
        %v969 = vadd.f32 %v960, %v965
        %v970 = vadd.f32 %v961, %v965
        %v971 = vadd.f32 %v962, %v965
        %v972 = vadd.f32 %v963, %v965
        %v973 = vadd.f32 %v964, %v965
        %v974 = vld [vmem:[#allocation8] sm:$0xff]
        %v975 = vld [vmem:[#allocation8 + $0x8] sm:$0xff]
        %v976 = vld [vmem:[#allocation8 + $0x10] sm:$0xff]
        %v977 = vld [vmem:[#allocation8 + $0x18] sm:$0xff]
        %v978 = vld [vmem:[#allocation7 + $0x4] sm:$0x1]
        %v979 = vperm.slane %v978, 0
        %v981 = vsel %vm664, %v766, 0
        %v984 = vsel %vm664, %v767, 0
        %v987 = vsel %vm664, %v768, 0
        %v990 = vsel %vm664, %v769, 0
        %992 = vmatpush.msra.mxu0 0.0
        %993 = vmatpush.msra.mxu0 0.0
        %994 = vmatpush.msra.mxu0 0.0
        %995 = vmatpush.msra.mxu0 0.0
        %996 = vmatpush.msra.mxu0 0.0
        %997 = vmatpush.msra.mxu0 0.0
        %998 = vmatpush.msra.mxu0 0.0
        %999 = vmatpush.msra.mxu0 0.0
        %1000 = vmatpush.msra.mxu0 0.0
        %1001 = vmatpush.msra.mxu0 0.0
        %1002 = vmatpush.msra.mxu0 0.0
        %1003 = vmatpush.msra.mxu0 0.0
        %1004 = vmatpush.msra.mxu0 %v977
        %1005 = vmatpush.msra.mxu0 %v976
        %1006 = vmatpush.msra.mxu0 %v975
        %1007 = vmatpush.msra.mxu0 %v974
        %1008 = vmatmul.f32.gmra.mxu0 %v981
        %v1009 = vpop.f32.mrf.mxu0
        %v1010 = vadd.f32 %v979, %v1009
        %1011 = vmatmul.f32.gmra.mxu0 %v984
        %v1012 = vpop.f32.mrf.mxu0
        %v1013 = vadd.f32 %v979, %v1012
        %1014 = vmatmul.f32.gmra.mxu0 %v987
        %v1015 = vpop.f32.mrf.mxu0
        %v1016 = vadd.f32 %v979, %v1015
        %1017 = vmatmul.f32.gmra.mxu0 %v990
        %v1018 = vpop.f32.mrf.mxu0
        %v1019 = vadd.f32 %v979, %v1018
        %1020 = vdwg.mxu0
        %v1021 = vld [vmem:[#allocation10] sm:$0xff]
        %v1022 = vld [vmem:[#allocation10 + $0x8] sm:$0xff]
        %v1023 = vld [vmem:[#allocation10 + $0x10] sm:$0xff]
        %v1024 = vld [vmem:[#allocation7 + $0x5] sm:$0x1]
        %v1025 = vperm.slane %v1024, 0
        %v1027 = vsel %vm772, %v966, 0
        %v1030 = vsel %vm772, %v967, 0
        %v1033 = vsel %vm772, %v968, 0
        %v1036 = vsel %vm772, %v969, 0
        %v1039 = vsel %vm772, %v970, 0
        %v1042 = vsel %vm772, %v971, 0
        %v1045 = vsel %vm772, %v972, 0
        %v1048 = vsel %vm772, %v973, 0
        %1050 = vmatpush.msra.mxu0 0.0
        %1051 = vmatpush.msra.mxu0 0.0
        %1052 = vmatpush.msra.mxu0 0.0
        %1053 = vmatpush.msra.mxu0 0.0
        %1054 = vmatpush.msra.mxu0 0.0
        %1055 = vmatpush.msra.mxu0 0.0
        %1056 = vmatpush.msra.mxu0 0.0
        %1057 = vmatpush.msra.mxu0 0.0
        %1058 = vmatpush.msra.mxu0 0.0
        %1059 = vmatpush.msra.mxu0 0.0
        %1060 = vmatpush.msra.mxu0 0.0
        %1061 = vmatpush.msra.mxu0 0.0
        %1062 = vmatpush.msra.mxu0 0.0
        %1063 = vmatpush.msra.mxu0 %v1023
        %1064 = vmatpush.msra.mxu0 %v1022
        %1065 = vmatpush.msra.mxu0 %v1021
        %1066 = vmatmul.f32.gmra.mxu0 %v1027
        %v1067 = vpop.f32.mrf.mxu0
        %v1068 = vadd.f32 %v1025, %v1067
        %1069 = vmatmul.f32.gmra.mxu0 %v1030
        %v1070 = vpop.f32.mrf.mxu0
        %v1071 = vadd.f32 %v1025, %v1070
        %1072 = vmatmul.f32.gmra.mxu0 %v1033
        %v1073 = vpop.f32.mrf.mxu0
        %v1074 = vadd.f32 %v1025, %v1073
        %1075 = vmatmul.f32.gmra.mxu0 %v1036
        %v1076 = vpop.f32.mrf.mxu0
        %v1077 = vadd.f32 %v1025, %v1076
        %1078 = vmatmul.f32.gmra.mxu0 %v1039
        %v1079 = vpop.f32.mrf.mxu0
        %v1080 = vadd.f32 %v1025, %v1079
        %1081 = vmatmul.f32.gmra.mxu0 %v1042
        %v1082 = vpop.f32.mrf.mxu0
        %v1083 = vadd.f32 %v1025, %v1082
        %1084 = vmatmul.f32.gmra.mxu0 %v1045
        %v1085 = vpop.f32.mrf.mxu0
        %v1086 = vadd.f32 %v1025, %v1085
        %1087 = vmatmul.f32.gmra.mxu0 %v1048
        %v1088 = vpop.f32.mrf.mxu0
        %v1089 = vadd.f32 %v1025, %v1088
        %1090 = vdwg.mxu0
        %v1091 = vld [vmem:[#allocation11] sm:$0xff]
        %v1092 = vld [vmem:[#allocation11 + $0x8] sm:$0xff]
        %v1093 = vld [vmem:[#allocation11 + $0x10] sm:$0xff]
        %v1094 = vld [vmem:[#allocation7 + $0x6] sm:$0x1]
        %v1095 = vperm.slane %v1094, 0
        %1096 = vmatpush.msra.mxu0 0.0
        %1097 = vmatpush.msra.mxu0 0.0
        %1098 = vmatpush.msra.mxu0 0.0
        %1099 = vmatpush.msra.mxu0 0.0
        %1100 = vmatpush.msra.mxu0 0.0
        %1101 = vmatpush.msra.mxu0 0.0
        %1102 = vmatpush.msra.mxu0 0.0
        %1103 = vmatpush.msra.mxu0 0.0
        %1104 = vmatpush.msra.mxu0 0.0
        %1105 = vmatpush.msra.mxu0 0.0
        %1106 = vmatpush.msra.mxu0 0.0
        %1107 = vmatpush.msra.mxu0 0.0
        %1108 = vmatpush.msra.mxu0 0.0
        %1109 = vmatpush.msra.mxu0 %v1093
        %1110 = vmatpush.msra.mxu0 %v1092
        %1111 = vmatpush.msra.mxu0 %v1091
        %1112 = vmatmul.f32.gmra.mxu0 %v1027
        %v1113 = vpop.f32.mrf.mxu0
        %v1114 = vadd.f32 %v1095, %v1113
        %1115 = vmatmul.f32.gmra.mxu0 %v1030
        %v1116 = vpop.f32.mrf.mxu0
        %v1117 = vadd.f32 %v1095, %v1116
        %1118 = vmatmul.f32.gmra.mxu0 %v1033
        %v1119 = vpop.f32.mrf.mxu0
        %v1120 = vadd.f32 %v1095, %v1119
        %1121 = vmatmul.f32.gmra.mxu0 %v1036
        %v1122 = vpop.f32.mrf.mxu0
        %v1123 = vadd.f32 %v1095, %v1122
        %1124 = vmatmul.f32.gmra.mxu0 %v1039
        %v1125 = vpop.f32.mrf.mxu0
        %v1126 = vadd.f32 %v1095, %v1125
        %1127 = vmatmul.f32.gmra.mxu0 %v1042
        %v1128 = vpop.f32.mrf.mxu0
        %v1129 = vadd.f32 %v1095, %v1128
        %1130 = vmatmul.f32.gmra.mxu0 %v1045
        %v1131 = vpop.f32.mrf.mxu0
        %v1132 = vadd.f32 %v1095, %v1131
        %1133 = vmatmul.f32.gmra.mxu0 %v1048
        %v1134 = vpop.f32.mrf.mxu0
        %v1135 = vadd.f32 %v1095, %v1134
        %1136 = vdwg.mxu0
        %vm1137 = vcmask 523264
        %v1139 = vsel %vm1137, %v1010, 0
        %v1142 = vsel %vm1137, %v1068, 0
        %v1145 = vsel %vm1137, %v1071, 0
        %1147 = vmatpush.xpose.msra.mxu0 0.0
        %1148 = vmatpush.xpose.msra.mxu0 0.0
        %1149 = vmatpush.xpose.msra.mxu0 0.0
        %1150 = vmatpush.xpose.msra.mxu0 0.0
        %1151 = vmatpush.xpose.msra.mxu0 0.0
        %1152 = vmatpush.xpose.msra.mxu0 0.0
        %1153 = vmatpush.xpose.msra.mxu0 0.0
        %1154 = vmatpush.xpose.msra.mxu0 0.0
        %1155 = vmatpush.xpose.msra.mxu0 0.0
        %1156 = vmatpush.xpose.msra.mxu0 0.0
        %1157 = vmatpush.xpose.msra.mxu0 0.0
        %1158 = vmatpush.xpose.msra.mxu0 0.0
        %1159 = vmatpush.xpose.msra.mxu0 0.0
        %1160 = vmatpush.xpose.msra.mxu0 0.0
        %1161 = vmatpush.xpose.msra.mxu0 %v1145
        %1162 = vmatpush.xpose.msra.mxu0 %v1142
        %1163 = vmatmul.f32.gmra.mxu0 %v1139
        %v1164 = vpop.f32.mrf.mxu0
        %v1165 = vadd.f32 0.0, %v1164
        %1166 = vdwg.mxu0
        %v1168 = vsel %vm1137, %v1013, 0
        %v1171 = vsel %vm1137, %v1074, 0
        %v1174 = vsel %vm1137, %v1077, 0
        %1176 = vmatpush.xpose.msra.mxu0 0.0
        %1177 = vmatpush.xpose.msra.mxu0 0.0
        %1178 = vmatpush.xpose.msra.mxu0 0.0
        %1179 = vmatpush.xpose.msra.mxu0 0.0
        %1180 = vmatpush.xpose.msra.mxu0 0.0
        %1181 = vmatpush.xpose.msra.mxu0 0.0
        %1182 = vmatpush.xpose.msra.mxu0 0.0
        %1183 = vmatpush.xpose.msra.mxu0 0.0
        %1184 = vmatpush.xpose.msra.mxu0 0.0
        %1185 = vmatpush.xpose.msra.mxu0 0.0
        %1186 = vmatpush.xpose.msra.mxu0 0.0
        %1187 = vmatpush.xpose.msra.mxu0 0.0
        %1188 = vmatpush.xpose.msra.mxu0 0.0
        %1189 = vmatpush.xpose.msra.mxu0 0.0
        %1190 = vmatpush.xpose.msra.mxu0 %v1174
        %1191 = vmatpush.xpose.msra.mxu0 %v1171
        %1192 = vmatmul.f32.gmra.mxu0 %v1168
        %v1193 = vpop.f32.mrf.mxu0
        %v1194 = vadd.f32 0.0, %v1193
        %1195 = vdwg.mxu0
        %v1197 = vsel %vm1137, %v1016, 0
        %v1200 = vsel %vm1137, %v1080, 0
        %v1203 = vsel %vm1137, %v1083, 0
        %1205 = vmatpush.xpose.msra.mxu0 0.0
        %1206 = vmatpush.xpose.msra.mxu0 0.0
        %1207 = vmatpush.xpose.msra.mxu0 0.0
        %1208 = vmatpush.xpose.msra.mxu0 0.0
        %1209 = vmatpush.xpose.msra.mxu0 0.0
        %1210 = vmatpush.xpose.msra.mxu0 0.0
        %1211 = vmatpush.xpose.msra.mxu0 0.0
        %1212 = vmatpush.xpose.msra.mxu0 0.0
        %1213 = vmatpush.xpose.msra.mxu0 0.0
        %1214 = vmatpush.xpose.msra.mxu0 0.0
        %1215 = vmatpush.xpose.msra.mxu0 0.0
        %1216 = vmatpush.xpose.msra.mxu0 0.0
        %1217 = vmatpush.xpose.msra.mxu0 0.0
        %1218 = vmatpush.xpose.msra.mxu0 0.0
        %1219 = vmatpush.xpose.msra.mxu0 %v1203
        %1220 = vmatpush.xpose.msra.mxu0 %v1200
        %1221 = vmatmul.f32.gmra.mxu0 %v1197
        %v1222 = vpop.f32.mrf.mxu0
        %v1223 = vadd.f32 0.0, %v1222
        %1224 = vdwg.mxu0
        %v1226 = vsel %vm1137, %v1019, 0
        %v1229 = vsel %vm1137, %v1086, 0
        %v1232 = vsel %vm1137, %v1089, 0
        %1234 = vmatpush.xpose.msra.mxu0 0.0
        %1235 = vmatpush.xpose.msra.mxu0 0.0
        %1236 = vmatpush.xpose.msra.mxu0 0.0
        %1237 = vmatpush.xpose.msra.mxu0 0.0
        %1238 = vmatpush.xpose.msra.mxu0 0.0
        %1239 = vmatpush.xpose.msra.mxu0 0.0
        %1240 = vmatpush.xpose.msra.mxu0 0.0
        %1241 = vmatpush.xpose.msra.mxu0 0.0
        %1242 = vmatpush.xpose.msra.mxu0 0.0
        %1243 = vmatpush.xpose.msra.mxu0 0.0
        %1244 = vmatpush.xpose.msra.mxu0 0.0
        %1245 = vmatpush.xpose.msra.mxu0 0.0
        %1246 = vmatpush.xpose.msra.mxu0 0.0
        %1247 = vmatpush.xpose.msra.mxu0 0.0
        %1248 = vmatpush.xpose.msra.mxu0 %v1232
        %1249 = vmatpush.xpose.msra.mxu0 %v1229
        %1250 = vmatmul.f32.gmra.mxu0 %v1226
        %v1251 = vpop.f32.mrf.mxu0
        %v1252 = vadd.f32 0.0, %v1251
        %1253 = vdwg.mxu0
        %vm1254 = vcmask 130048
        %v1255 = vsel %vm1254, %v1165, -inf
        %1256 = vmax.xlane.f32.xlu0 %v1255
        %v1257 = vpop.xlane.xlu0 %1256
        %v1258 = vsel %vm1254, %v1194, -inf
        %1259 = vmax.xlane.f32.xlu0 %v1258
        %v1260 = vpop.xlane.xlu0 %1259
        %v1261 = vsel %vm1254, %v1223, -inf
        %1262 = vmax.xlane.f32.xlu0 %v1261
        %v1263 = vpop.xlane.xlu0 %1262
        %v1264 = vsel %vm1254, %v1252, -inf
        %1265 = vmax.xlane.f32.xlu0 %v1264
        %v1266 = vpop.xlane.xlu0 %1265
        %v1267 = vsub.f32 %v1165, %v1257
        %v1268 = vsub.f32 %v1194, %v1260
        %v1269 = vsub.f32 %v1223, %v1263
        %v1270 = vsub.f32 %v1252, %v1266
        %v1271 = vmul.f32 %v1267, 1.442695
        %v1272 = vpow.pop %v1271
        %v1273 = vmul.f32 %v1268, 1.442695
        %v1274 = vpow.pop %v1273
        %v1275 = vmul.f32 %v1269, 1.442695
        %v1276 = vpow.pop %v1275
        %v1277 = vmul.f32 %v1270, 1.442695
        %v1278 = vpow.pop %v1277
        %v1279 = vsel %vm1254, %v1272, 0.0
        %1280 = vadd.xlane.f32.xlu0 %v1279
        %v1281 = vpop.xlane.xlu0 %1280
        %v1282 = vsel %vm1254, %v1274, 0.0
        %1283 = vadd.xlane.f32.xlu0 %v1282
        %v1284 = vpop.xlane.xlu0 %1283
        %v1285 = vsel %vm1254, %v1276, 0.0
        %1286 = vadd.xlane.f32.xlu0 %v1285
        %v1287 = vpop.xlane.xlu0 %1286
        %v1288 = vsel %vm1254, %v1278, 0.0
        %1289 = vadd.xlane.f32.xlu0 %v1288
        %v1290 = vpop.xlane.xlu0 %1289
        %v1291 = vrcp.pop %v1281
        %v1292 = vmul.f32 %v1281, %v1291
        %v1293 = vsub.f32 1.0, %v1292
        %v1294 = vmul.f32 %v1291, %v1293
        %v1295 = vadd.f32 %v1291, %v1294
        %vm1296 = vweird.f32 %v1281
        %vm1297 = vweird.f32 %v1291
        %vm1298 = vmor %vm1296, %vm1297
        %v1299 = vsel %vm1298, %v1291, %v1295
        %v1300 = vand.u32 2147483647, %v1281
        %vm1301 = vcmp.eq.f32.partialorder %v1300, 8.507059e+37
        %v1302 = vand.u32 %v1281, 2147483648
        %v1303 = vor.u32 1.1754944e-38, %v1302
        %v1304 = vsel %vm1301, %v1303, %v1299
        %v1305 = vrcp.pop %v1284
        %v1306 = vmul.f32 %v1284, %v1305
        %v1307 = vsub.f32 1.0, %v1306
        %v1308 = vmul.f32 %v1305, %v1307
        %v1309 = vadd.f32 %v1305, %v1308
        %vm1310 = vweird.f32 %v1284
        %vm1311 = vweird.f32 %v1305
        %vm1312 = vmor %vm1310, %vm1311
        %v1313 = vsel %vm1312, %v1305, %v1309
        %v1314 = vand.u32 2147483647, %v1284
        %vm1315 = vcmp.eq.f32.partialorder %v1314, 8.507059e+37
        %v1316 = vand.u32 %v1284, 2147483648
        %v1317 = vor.u32 1.1754944e-38, %v1316
        %v1318 = vsel %vm1315, %v1317, %v1313
        %v1319 = vrcp.pop %v1287
        %v1320 = vmul.f32 %v1287, %v1319
        %v1321 = vsub.f32 1.0, %v1320
        %v1322 = vmul.f32 %v1319, %v1321
        %v1323 = vadd.f32 %v1319, %v1322
        %vm1324 = vweird.f32 %v1287
        %vm1325 = vweird.f32 %v1319
        %vm1326 = vmor %vm1324, %vm1325
        %v1327 = vsel %vm1326, %v1319, %v1323
        %v1328 = vand.u32 2147483647, %v1287
        %vm1329 = vcmp.eq.f32.partialorder %v1328, 8.507059e+37
        %v1330 = vand.u32 %v1287, 2147483648
        %v1331 = vor.u32 1.1754944e-38, %v1330
        %v1332 = vsel %vm1329, %v1331, %v1327
        %v1333 = vrcp.pop %v1290
        %v1334 = vmul.f32 %v1290, %v1333
        %v1335 = vsub.f32 1.0, %v1334
        %v1336 = vmul.f32 %v1333, %v1335
        %v1337 = vadd.f32 %v1333, %v1336
        %vm1338 = vweird.f32 %v1290
        %vm1339 = vweird.f32 %v1333
        %vm1340 = vmor %vm1338, %vm1339
        %v1341 = vsel %vm1340, %v1333, %v1337
        %v1342 = vand.u32 2147483647, %v1290
        %vm1343 = vcmp.eq.f32.partialorder %v1342, 8.507059e+37
        %v1344 = vand.u32 %v1290, 2147483648
        %v1345 = vor.u32 1.1754944e-38, %v1344
        %v1346 = vsel %vm1343, %v1345, %v1341
        %v1347 = vmul.f32 %v1272, %v1304
        %v1348 = vmul.f32 %v1274, %v1318
        %v1349 = vmul.f32 %v1276, %v1332
        %v1350 = vmul.f32 %v1278, %v1346
        %v1352 = vsel %vm1254, %v1347, 0
        %1354 = vmatpush.msra.mxu0 0.0
        %1355 = vmatpush.msra.mxu0 0.0
        %1356 = vmatpush.msra.mxu0 0.0
        %1357 = vmatpush.msra.mxu0 0.0
        %1358 = vmatpush.msra.mxu0 0.0
        %1359 = vmatpush.msra.mxu0 0.0
        %1360 = vmatpush.msra.mxu0 0.0
        %1361 = vmatpush.msra.mxu0 0.0
        %1362 = vmatpush.msra.mxu0 0.0
        %1363 = vmatpush.msra.mxu0 0.0
        %1364 = vmatpush.msra.mxu0 0.0
        %1365 = vmatpush.msra.mxu0 0.0
        %1366 = vmatpush.msra.mxu0 0.0
        %1367 = vmatpush.msra.mxu0 0.0
        %1368 = vmatpush.msra.mxu0 %v1117
        %1369 = vmatpush.msra.mxu0 %v1114
        %1370 = vmatmul.f32.gmra.mxu0 %v1352
        %v1371 = vpop.f32.mrf.mxu0
        %v1372 = vadd.f32 0.0, %v1371
        %1373 = vdwg.mxu0
        %v1375 = vsel %vm1254, %v1348, 0
        %1377 = vmatpush.msra.mxu0 0.0
        %1378 = vmatpush.msra.mxu0 0.0
        %1379 = vmatpush.msra.mxu0 0.0
        %1380 = vmatpush.msra.mxu0 0.0
        %1381 = vmatpush.msra.mxu0 0.0
        %1382 = vmatpush.msra.mxu0 0.0
        %1383 = vmatpush.msra.mxu0 0.0
        %1384 = vmatpush.msra.mxu0 0.0
        %1385 = vmatpush.msra.mxu0 0.0
        %1386 = vmatpush.msra.mxu0 0.0
        %1387 = vmatpush.msra.mxu0 0.0
        %1388 = vmatpush.msra.mxu0 0.0
        %1389 = vmatpush.msra.mxu0 0.0
        %1390 = vmatpush.msra.mxu0 0.0
        %1391 = vmatpush.msra.mxu0 %v1123
        %1392 = vmatpush.msra.mxu0 %v1120
        %1393 = vmatmul.f32.gmra.mxu0 %v1375
        %v1394 = vpop.f32.mrf.mxu0
        %v1395 = vadd.f32 0.0, %v1394
        %1396 = vdwg.mxu0
        %v1398 = vsel %vm1254, %v1349, 0
        %1400 = vmatpush.msra.mxu0 0.0
        %1401 = vmatpush.msra.mxu0 0.0
        %1402 = vmatpush.msra.mxu0 0.0
        %1403 = vmatpush.msra.mxu0 0.0
        %1404 = vmatpush.msra.mxu0 0.0
        %1405 = vmatpush.msra.mxu0 0.0
        %1406 = vmatpush.msra.mxu0 0.0
        %1407 = vmatpush.msra.mxu0 0.0
        %1408 = vmatpush.msra.mxu0 0.0
        %1409 = vmatpush.msra.mxu0 0.0
        %1410 = vmatpush.msra.mxu0 0.0
        %1411 = vmatpush.msra.mxu0 0.0
        %1412 = vmatpush.msra.mxu0 0.0
        %1413 = vmatpush.msra.mxu0 0.0
        %1414 = vmatpush.msra.mxu0 %v1129
        %1415 = vmatpush.msra.mxu0 %v1126
        %1416 = vmatmul.f32.gmra.mxu0 %v1398
        %v1417 = vpop.f32.mrf.mxu0
        %v1418 = vadd.f32 0.0, %v1417
        %1419 = vdwg.mxu0
        %v1421 = vsel %vm1254, %v1350, 0
        %1423 = vmatpush.msra.mxu0 0.0
        %1424 = vmatpush.msra.mxu0 0.0
        %1425 = vmatpush.msra.mxu0 0.0
        %1426 = vmatpush.msra.mxu0 0.0
        %1427 = vmatpush.msra.mxu0 0.0
        %1428 = vmatpush.msra.mxu0 0.0
        %1429 = vmatpush.msra.mxu0 0.0
        %1430 = vmatpush.msra.mxu0 0.0
        %1431 = vmatpush.msra.mxu0 0.0
        %1432 = vmatpush.msra.mxu0 0.0
        %1433 = vmatpush.msra.mxu0 0.0
        %1434 = vmatpush.msra.mxu0 0.0
        %1435 = vmatpush.msra.mxu0 0.0
        %1436 = vmatpush.msra.mxu0 0.0
        %1437 = vmatpush.msra.mxu0 %v1135
        %1438 = vmatpush.msra.mxu0 %v1132
        %1439 = vmatmul.f32.gmra.mxu0 %v1421
        %v1440 = vpop.f32.mrf.mxu0
        %v1441 = vadd.f32 0.0, %v1440
        %1442 = vdwg.mxu0
        %v1443 = vld [vmem:[%s7] sm:$0xff]
        %v1444 = vld [vmem:[%s7 + $0x8] sm:$0xff]
        %v1445 = vld [vmem:[%s7 + $0x10] sm:$0xff]
        %v1446 = vld [vmem:[%s7 + $0x18] sm:$0xff]
        %v1447 = vld [vmem:[%s7 + $0x20] sm:$0xff]
        %v1448 = vld [vmem:[%s7 + $0x28] sm:$0xff]
        %v1449 = vld [vmem:[%s7 + $0x30] sm:$0xff]
        %v1450 = vld [vmem:[%s7 + $0x38] sm:$0xff]
        %v1451 = vld [vmem:[#allocation7 + $0x7] sm:$0x1]
        %v1452 = vperm.slane %v1451, 0
        %v1454 = vsel %vm1137, %v1372, 0
        %v1457 = vsel %vm1137, %v1395, 0
        %v1460 = vsel %vm1137, %v1418, 0
        %v1463 = vsel %vm1137, %v1441, 0
        %1465 = vmatpush.msra.mxu0 0.0
        %1466 = vmatpush.msra.mxu0 0.0
        %1467 = vmatpush.msra.mxu0 0.0
        %1468 = vmatpush.msra.mxu0 0.0
        %1469 = vmatpush.msra.mxu0 0.0
        %1470 = vmatpush.msra.mxu0 0.0
        %1471 = vmatpush.msra.mxu0 0.0
        %1472 = vmatpush.msra.mxu0 0.0
        %1473 = vmatpush.msra.mxu0 %v1450
        %1474 = vmatpush.msra.mxu0 %v1449
        %1475 = vmatpush.msra.mxu0 %v1448
        %1476 = vmatpush.msra.mxu0 %v1447
        %1477 = vmatpush.msra.mxu0 %v1446
        %1478 = vmatpush.msra.mxu0 %v1445
        %1479 = vmatpush.msra.mxu0 %v1444
        %1480 = vmatpush.msra.mxu0 %v1443
        %1481 = vmatmul.f32.gmra.mxu0 %v1454
        %v1482 = vpop.f32.mrf.mxu0
        %v1483 = vadd.f32 %v1452, %v1482
        %1484 = vmatmul.f32.gmra.mxu0 %v1457
        %v1485 = vpop.f32.mrf.mxu0
        %v1486 = vadd.f32 %v1452, %v1485
        %1487 = vmatmul.f32.gmra.mxu0 %v1460
        %v1488 = vpop.f32.mrf.mxu0
        %v1489 = vadd.f32 %v1452, %v1488
        %1490 = vmatmul.f32.gmra.mxu0 %v1463
        %v1491 = vpop.f32.mrf.mxu0
        %v1492 = vadd.f32 %v1452, %v1491
        %1493 = vdwg.mxu0
        %v1494 = vld [vmem:[#allocation7 + $0x8] sm:$0x1]
        %v1495 = vld [vmem:[#allocation7 + $0x9] sm:$0x1]
        %v1496 = vperm.slane %v1494, 0
        %v1497 = vmul.f32 %v756, %v1496
        %v1498 = vmul.f32 %v757, %v1496
        %v1499 = vmul.f32 %v758, %v1496
        %v1500 = vmul.f32 %v759, %v1496
        %v1501 = vperm.slane %v1495, 0
        %v1502 = vadd.f32 %v1497, %v1501
        %v1503 = vadd.f32 %v1498, %v1501
        %v1504 = vadd.f32 %v1499, %v1501
        %v1505 = vadd.f32 %v1500, %v1501
        %v1506 = vld [vmem:[#allocation7 + $0xa] sm:$0x1]
        %v1507 = vld [vmem:[#allocation7 + $0xb] sm:$0x1]
        %vm1508 = vcmask 326656
        %v1509 = vsel %vm1508, %v658, 0.0
        %1510 = vadd.xlane.f32.xlu0 %v1509
        %v1511 = vpop.xlane.xlu0 %1510
        %v1512 = vsel %vm1508, %v659, 0.0
        %1513 = vadd.xlane.f32.xlu0 %v1512
        %v1514 = vpop.xlane.xlu0 %1513
        %v1515 = vsel %vm1508, %v660, 0.0
        %1516 = vadd.xlane.f32.xlu0 %v1515
        %v1517 = vpop.xlane.xlu0 %1516
        %v1518 = vsel %vm1508, %v661, 0.0
        %1519 = vadd.xlane.f32.xlu0 %v1518
        %v1520 = vpop.xlane.xlu0 %1519
        %v1521 = vrcp.pop 40.0
        %v1522 = vmul.f32 40.0, %v1521
        %v1523 = vsub.f32 1.0, %v1522
        %v1524 = vmul.f32 %v1521, %v1523
        %v1525 = vadd.f32 %v1521, %v1524
        %vm1526 = vweird.f32 %v1521
        %v1527 = vsel %vm1526, %v1521, %v1525
        %v1528 = vmul.f32 %v1511, %v1527
        %v1529 = vmul.f32 %v1514, %v1527
        %v1530 = vmul.f32 %v1517, %v1527
        %v1531 = vmul.f32 %v1520, %v1527
        %v1532 = vsub.f32 %v658, %v1528
        %v1533 = vsub.f32 %v659, %v1529
        %v1534 = vsub.f32 %v660, %v1530
        %v1535 = vsub.f32 %v661, %v1531
        %v1536 = vmul.f32 %v1532, %v1532
        %v1537 = vmul.f32 %v1533, %v1533
        %v1538 = vmul.f32 %v1534, %v1534
        %v1539 = vmul.f32 %v1535, %v1535
        %v1540 = vsel %vm1508, %v1536, 0.0
        %1541 = vadd.xlane.f32.xlu0 %v1540
        %v1542 = vpop.xlane.xlu0 %1541
        %v1543 = vsel %vm1508, %v1537, 0.0
        %1544 = vadd.xlane.f32.xlu0 %v1543
        %v1545 = vpop.xlane.xlu0 %1544
        %v1546 = vsel %vm1508, %v1538, 0.0
        %1547 = vadd.xlane.f32.xlu0 %v1546
        %v1548 = vpop.xlane.xlu0 %1547
        %v1549 = vsel %vm1508, %v1539, 0.0
        %1550 = vadd.xlane.f32.xlu0 %v1549
        %v1551 = vpop.xlane.xlu0 %1550
        %v1552 = vmul.f32 %v1542, %v1527
        %v1553 = vmul.f32 %v1545, %v1527
        %v1554 = vmul.f32 %v1548, %v1527
        %v1555 = vmul.f32 %v1551, %v1527
        %v1556 = vadd.f32 %v1552, 1e-05
        %v1557 = vadd.f32 %v1553, 1e-05
        %v1558 = vadd.f32 %v1554, 1e-05
        %v1559 = vadd.f32 %v1555, 1e-05
        %v1560 = vrsqrt.pop %v1556
        %v1561 = vmul.f32 %v1560, %v1556
        %v1562 = vmul.f32 %v1561, %v1560
        %v1563 = vmul.f32 0.5, %v1562
        %v1564 = vsub.f32 1.5, %v1563
        %v1565 = vmul.f32 %v1560, %v1564
        %vm1566 = vweird.f32 %v1556
        %vm1567 = vweird.f32 %v1560
        %vm1568 = vmor %vm1566, %vm1567
        %v1569 = vsel %vm1568, %v1560, %v1565
        %v1570 = vrsqrt.pop %v1557
        %v1571 = vmul.f32 %v1570, %v1557
        %v1572 = vmul.f32 %v1571, %v1570
        %v1573 = vmul.f32 0.5, %v1572
        %v1574 = vsub.f32 1.5, %v1573
        %v1575 = vmul.f32 %v1570, %v1574
        %vm1576 = vweird.f32 %v1557
        %vm1577 = vweird.f32 %v1570
        %vm1578 = vmor %vm1576, %vm1577
        %v1579 = vsel %vm1578, %v1570, %v1575
        %v1580 = vrsqrt.pop %v1558
        %v1581 = vmul.f32 %v1580, %v1558
        %v1582 = vmul.f32 %v1581, %v1580
        %v1583 = vmul.f32 0.5, %v1582
        %v1584 = vsub.f32 1.5, %v1583
        %v1585 = vmul.f32 %v1580, %v1584
        %vm1586 = vweird.f32 %v1558
        %vm1587 = vweird.f32 %v1580
        %vm1588 = vmor %vm1586, %vm1587
        %v1589 = vsel %vm1588, %v1580, %v1585
        %v1590 = vrsqrt.pop %v1559
        %v1591 = vmul.f32 %v1590, %v1559
        %v1592 = vmul.f32 %v1591, %v1590
        %v1593 = vmul.f32 0.5, %v1592
        %v1594 = vsub.f32 1.5, %v1593
        %v1595 = vmul.f32 %v1590, %v1594
        %vm1596 = vweird.f32 %v1559
        %vm1597 = vweird.f32 %v1590
        %vm1598 = vmor %vm1596, %vm1597
        %v1599 = vsel %vm1598, %v1590, %v1595
        %v1600 = vmul.f32 %v1532, %v1569
        %v1601 = vmul.f32 %v1533, %v1579
        %v1602 = vmul.f32 %v1534, %v1589
        %v1603 = vmul.f32 %v1535, %v1599
        %v1604 = vperm.slane %v1506, 0
        %v1605 = vmul.f32 %v1600, %v1604
        %v1606 = vmul.f32 %v1601, %v1604
        %v1607 = vmul.f32 %v1602, %v1604
        %v1608 = vmul.f32 %v1603, %v1604
        %v1609 = vperm.slane %v1507, 0
        %v1610 = vadd.f32 %v1605, %v1609
        %v1611 = vadd.f32 %v1606, %v1609
        %v1612 = vadd.f32 %v1607, %v1609
        %v1613 = vadd.f32 %v1608, %v1609
        %v1614 = vld [vmem:[#allocation13] sm:$0xff]
        %v1615 = vld [vmem:[#allocation13 + $0x8] sm:$0xff]
        %v1616 = vld [vmem:[#allocation13 + $0x10] sm:$0xff]
        %v1617 = vld [vmem:[#allocation13 + $0x18] sm:$0xff]
        %v1618 = vld [vmem:[#allocation7 + $0xc] sm:$0x1]
        %v1619 = vperm.slane %v1618, 0
        %v1621 = vsel %vm664, %v1502, 0
        %v1624 = vsel %vm664, %v1503, 0
        %v1627 = vsel %vm664, %v1504, 0
        %v1630 = vsel %vm664, %v1505, 0
        %1632 = vmatpush.msra.mxu0 0.0
        %1633 = vmatpush.msra.mxu0 0.0
        %1634 = vmatpush.msra.mxu0 0.0
        %1635 = vmatpush.msra.mxu0 0.0
        %1636 = vmatpush.msra.mxu0 0.0
        %1637 = vmatpush.msra.mxu0 0.0
        %1638 = vmatpush.msra.mxu0 0.0
        %1639 = vmatpush.msra.mxu0 0.0
        %1640 = vmatpush.msra.mxu0 0.0
        %1641 = vmatpush.msra.mxu0 0.0
        %1642 = vmatpush.msra.mxu0 0.0
        %1643 = vmatpush.msra.mxu0 0.0
        %1644 = vmatpush.msra.mxu0 %v1617
        %1645 = vmatpush.msra.mxu0 %v1616
        %1646 = vmatpush.msra.mxu0 %v1615
        %1647 = vmatpush.msra.mxu0 %v1614
        %1648 = vmatmul.f32.gmra.mxu0 %v1621
        %v1649 = vpop.f32.mrf.mxu0
        %v1650 = vadd.f32 %v1619, %v1649
        %1651 = vmatmul.f32.gmra.mxu0 %v1624
        %v1652 = vpop.f32.mrf.mxu0
        %v1653 = vadd.f32 %v1619, %v1652
        %1654 = vmatmul.f32.gmra.mxu0 %v1627
        %v1655 = vpop.f32.mrf.mxu0
        %v1656 = vadd.f32 %v1619, %v1655
        %1657 = vmatmul.f32.gmra.mxu0 %v1630
        %v1658 = vpop.f32.mrf.mxu0
        %v1659 = vadd.f32 %v1619, %v1658
        %1660 = vdwg.mxu0
        %v1661 = vld [vmem:[%s9] sm:$0xff]
        %v1662 = vld [vmem:[%s9 + $0x8] sm:$0xff]
        %v1663 = vld [vmem:[%s9 + $0x10] sm:$0xff]
        %v1664 = vld [vmem:[%s9 + $0x18] sm:$0xff]
        %v1665 = vld [vmem:[%s9 + $0x20] sm:$0xff]
        %v1666 = vld [vmem:[#allocation7 + $0xd] sm:$0x1]
        %v1667 = vperm.slane %v1666, 0
        %v1669 = vsel %vm1508, %v1610, 0
        %v1672 = vsel %vm1508, %v1611, 0
        %v1675 = vsel %vm1508, %v1612, 0
        %v1678 = vsel %vm1508, %v1613, 0
        %1680 = vmatpush.msra.mxu0 0.0
        %1681 = vmatpush.msra.mxu0 0.0
        %1682 = vmatpush.msra.mxu0 0.0
        %1683 = vmatpush.msra.mxu0 0.0
        %1684 = vmatpush.msra.mxu0 0.0
        %1685 = vmatpush.msra.mxu0 0.0
        %1686 = vmatpush.msra.mxu0 0.0
        %1687 = vmatpush.msra.mxu0 0.0
        %1688 = vmatpush.msra.mxu0 0.0
        %1689 = vmatpush.msra.mxu0 0.0
        %1690 = vmatpush.msra.mxu0 0.0
        %1691 = vmatpush.msra.mxu0 %v1665
        %1692 = vmatpush.msra.mxu0 %v1664
        %1693 = vmatpush.msra.mxu0 %v1663
        %1694 = vmatpush.msra.mxu0 %v1662
        %1695 = vmatpush.msra.mxu0 %v1661
        %1696 = vmatmul.f32.gmra.mxu0 %v1669
        %v1697 = vpop.f32.mrf.mxu0
        %v1698 = vadd.f32 %v1667, %v1697
        %1699 = vmatmul.f32.gmra.mxu0 %v1672
        %v1700 = vpop.f32.mrf.mxu0
        %v1701 = vadd.f32 %v1667, %v1700
        %1702 = vmatmul.f32.gmra.mxu0 %v1675
        %v1703 = vpop.f32.mrf.mxu0
        %v1704 = vadd.f32 %v1667, %v1703
        %1705 = vmatmul.f32.gmra.mxu0 %v1678
        %v1706 = vpop.f32.mrf.mxu0
        %v1707 = vadd.f32 %v1667, %v1706
        %1708 = vdwg.mxu0
        %v1709 = vld [vmem:[#allocation14] sm:$0xff]
        %v1710 = vld [vmem:[#allocation14 + $0x8] sm:$0xff]
        %v1711 = vld [vmem:[#allocation14 + $0x10] sm:$0xff]
        %v1712 = vld [vmem:[#allocation14 + $0x18] sm:$0xff]
        %v1713 = vld [vmem:[#allocation14 + $0x20] sm:$0xff]
        %v1714 = vld [vmem:[#allocation7 + $0xe] sm:$0x1]
        %v1715 = vperm.slane %v1714, 0
        %1716 = vmatpush.msra.mxu0 0.0
        %1717 = vmatpush.msra.mxu0 0.0
        %1718 = vmatpush.msra.mxu0 0.0
        %1719 = vmatpush.msra.mxu0 0.0
        %1720 = vmatpush.msra.mxu0 0.0
        %1721 = vmatpush.msra.mxu0 0.0
        %1722 = vmatpush.msra.mxu0 0.0
        %1723 = vmatpush.msra.mxu0 0.0
        %1724 = vmatpush.msra.mxu0 0.0
        %1725 = vmatpush.msra.mxu0 0.0
        %1726 = vmatpush.msra.mxu0 0.0
        %1727 = vmatpush.msra.mxu0 %v1713
        %1728 = vmatpush.msra.mxu0 %v1712
        %1729 = vmatpush.msra.mxu0 %v1711
        %1730 = vmatpush.msra.mxu0 %v1710
        %1731 = vmatpush.msra.mxu0 %v1709
        %1732 = vmatmul.f32.gmra.mxu0 %v1669
        %v1733 = vpop.f32.mrf.mxu0
        %v1734 = vadd.f32 %v1715, %v1733
        %1735 = vmatmul.f32.gmra.mxu0 %v1672
        %v1736 = vpop.f32.mrf.mxu0
        %v1737 = vadd.f32 %v1715, %v1736
        %1738 = vmatmul.f32.gmra.mxu0 %v1675
        %v1739 = vpop.f32.mrf.mxu0
        %v1740 = vadd.f32 %v1715, %v1739
        %1741 = vmatmul.f32.gmra.mxu0 %v1678
        %v1742 = vpop.f32.mrf.mxu0
        %v1743 = vadd.f32 %v1715, %v1742
        %1744 = vdwg.mxu0
        %v1746 = vsel %vm1137, %v1650, 0
        %v1749 = vsel %vm1137, %v1698, 0
        %1751 = vmatpush.xpose.msra.mxu0 0.0
        %1752 = vmatpush.xpose.msra.mxu0 0.0
        %1753 = vmatpush.xpose.msra.mxu0 0.0
        %1754 = vmatpush.xpose.msra.mxu0 0.0
        %1755 = vmatpush.xpose.msra.mxu0 0.0
        %1756 = vmatpush.xpose.msra.mxu0 0.0
        %1757 = vmatpush.xpose.msra.mxu0 0.0
        %1758 = vmatpush.xpose.msra.mxu0 0.0
        %1759 = vmatpush.xpose.msra.mxu0 0.0
        %1760 = vmatpush.xpose.msra.mxu0 0.0
        %1761 = vmatpush.xpose.msra.mxu0 0.0
        %1762 = vmatpush.xpose.msra.mxu0 0.0
        %1763 = vmatpush.xpose.msra.mxu0 0.0
        %1764 = vmatpush.xpose.msra.mxu0 0.0
        %1765 = vmatpush.xpose.msra.mxu0 0.0
        %1766 = vmatpush.xpose.msra.mxu0 %v1749
        %1767 = vmatmul.f32.gmra.mxu0 %v1746
        %v1768 = vpop.f32.mrf.mxu0
        %v1769 = vadd.f32 0.0, %v1768
        %1770 = vdwg.mxu0
        %v1772 = vsel %vm1137, %v1653, 0
        %v1775 = vsel %vm1137, %v1701, 0
        %1777 = vmatpush.xpose.msra.mxu0 0.0
        %1778 = vmatpush.xpose.msra.mxu0 0.0
        %1779 = vmatpush.xpose.msra.mxu0 0.0
        %1780 = vmatpush.xpose.msra.mxu0 0.0
        %1781 = vmatpush.xpose.msra.mxu0 0.0
        %1782 = vmatpush.xpose.msra.mxu0 0.0
        %1783 = vmatpush.xpose.msra.mxu0 0.0
        %1784 = vmatpush.xpose.msra.mxu0 0.0
        %1785 = vmatpush.xpose.msra.mxu0 0.0
        %1786 = vmatpush.xpose.msra.mxu0 0.0
        %1787 = vmatpush.xpose.msra.mxu0 0.0
        %1788 = vmatpush.xpose.msra.mxu0 0.0
        %1789 = vmatpush.xpose.msra.mxu0 0.0
        %1790 = vmatpush.xpose.msra.mxu0 0.0
        %1791 = vmatpush.xpose.msra.mxu0 0.0
        %1792 = vmatpush.xpose.msra.mxu0 %v1775
        %1793 = vmatmul.f32.gmra.mxu0 %v1772
        %v1794 = vpop.f32.mrf.mxu0
        %v1795 = vadd.f32 0.0, %v1794
        %1796 = vdwg.mxu0
        %v1798 = vsel %vm1137, %v1656, 0
        %v1801 = vsel %vm1137, %v1704, 0
        %1803 = vmatpush.xpose.msra.mxu0 0.0
        %1804 = vmatpush.xpose.msra.mxu0 0.0
        %1805 = vmatpush.xpose.msra.mxu0 0.0
        %1806 = vmatpush.xpose.msra.mxu0 0.0
        %1807 = vmatpush.xpose.msra.mxu0 0.0
        %1808 = vmatpush.xpose.msra.mxu0 0.0
        %1809 = vmatpush.xpose.msra.mxu0 0.0
        %1810 = vmatpush.xpose.msra.mxu0 0.0
        %1811 = vmatpush.xpose.msra.mxu0 0.0
        %1812 = vmatpush.xpose.msra.mxu0 0.0
        %1813 = vmatpush.xpose.msra.mxu0 0.0
        %1814 = vmatpush.xpose.msra.mxu0 0.0
        %1815 = vmatpush.xpose.msra.mxu0 0.0
        %1816 = vmatpush.xpose.msra.mxu0 0.0
        %1817 = vmatpush.xpose.msra.mxu0 0.0
        %1818 = vmatpush.xpose.msra.mxu0 %v1801
        %1819 = vmatmul.f32.gmra.mxu0 %v1798
        %v1820 = vpop.f32.mrf.mxu0
        %v1821 = vadd.f32 0.0, %v1820
        %1822 = vdwg.mxu0
        %v1824 = vsel %vm1137, %v1659, 0
        %v1827 = vsel %vm1137, %v1707, 0
        %1829 = vmatpush.xpose.msra.mxu0 0.0
        %1830 = vmatpush.xpose.msra.mxu0 0.0
        %1831 = vmatpush.xpose.msra.mxu0 0.0
        %1832 = vmatpush.xpose.msra.mxu0 0.0
        %1833 = vmatpush.xpose.msra.mxu0 0.0
        %1834 = vmatpush.xpose.msra.mxu0 0.0
        %1835 = vmatpush.xpose.msra.mxu0 0.0
        %1836 = vmatpush.xpose.msra.mxu0 0.0
        %1837 = vmatpush.xpose.msra.mxu0 0.0
        %1838 = vmatpush.xpose.msra.mxu0 0.0
        %1839 = vmatpush.xpose.msra.mxu0 0.0
        %1840 = vmatpush.xpose.msra.mxu0 0.0
        %1841 = vmatpush.xpose.msra.mxu0 0.0
        %1842 = vmatpush.xpose.msra.mxu0 0.0
        %1843 = vmatpush.xpose.msra.mxu0 0.0
        %1844 = vmatpush.xpose.msra.mxu0 %v1827
        %1845 = vmatmul.f32.gmra.mxu0 %v1824
        %v1846 = vpop.f32.mrf.mxu0
        %v1847 = vadd.f32 0.0, %v1846
        %1848 = vdwg.mxu0
        %vm1849 = vcmask 64512
        %v1850 = vsel %vm1849, %v1769, -inf
        %1851 = vmax.xlane.f32.xlu0 %v1850
        %v1852 = vpop.xlane.xlu0 %1851
        %v1853 = vsel %vm1849, %v1795, -inf
        %1854 = vmax.xlane.f32.xlu0 %v1853
        %v1855 = vpop.xlane.xlu0 %1854
        %v1856 = vsel %vm1849, %v1821, -inf
        %1857 = vmax.xlane.f32.xlu0 %v1856
        %v1858 = vpop.xlane.xlu0 %1857
        %v1859 = vsel %vm1849, %v1847, -inf
        %1860 = vmax.xlane.f32.xlu0 %v1859
        %v1861 = vpop.xlane.xlu0 %1860
        %v1862 = vsub.f32 %v1769, %v1852
        %v1863 = vsub.f32 %v1795, %v1855
        %v1864 = vsub.f32 %v1821, %v1858
        %v1865 = vsub.f32 %v1847, %v1861
        %v1866 = vmul.f32 %v1862, 1.442695
        %v1867 = vpow.pop %v1866
        %v1868 = vmul.f32 %v1863, 1.442695
        %v1869 = vpow.pop %v1868
        %v1870 = vmul.f32 %v1864, 1.442695
        %v1871 = vpow.pop %v1870
        %v1872 = vmul.f32 %v1865, 1.442695
        %v1873 = vpow.pop %v1872
        %v1874 = vsel %vm1849, %v1867, 0.0
        %1875 = vadd.xlane.f32.xlu0 %v1874
        %v1876 = vpop.xlane.xlu0 %1875
        %v1877 = vsel %vm1849, %v1869, 0.0
        %1878 = vadd.xlane.f32.xlu0 %v1877
        %v1879 = vpop.xlane.xlu0 %1878
        %v1880 = vsel %vm1849, %v1871, 0.0
        %1881 = vadd.xlane.f32.xlu0 %v1880
        %v1882 = vpop.xlane.xlu0 %1881
        %v1883 = vsel %vm1849, %v1873, 0.0
        %1884 = vadd.xlane.f32.xlu0 %v1883
        %v1885 = vpop.xlane.xlu0 %1884
        %v1886 = vrcp.pop %v1876
        %v1887 = vmul.f32 %v1876, %v1886
        %v1888 = vsub.f32 1.0, %v1887
        %v1889 = vmul.f32 %v1886, %v1888
        %v1890 = vadd.f32 %v1886, %v1889
        %vm1891 = vweird.f32 %v1876
        %vm1892 = vweird.f32 %v1886
        %vm1893 = vmor %vm1891, %vm1892
        %v1894 = vsel %vm1893, %v1886, %v1890
        %v1895 = vand.u32 2147483647, %v1876
        %vm1896 = vcmp.eq.f32.partialorder %v1895, 8.507059e+37
        %v1897 = vand.u32 %v1876, 2147483648
        %v1898 = vor.u32 1.1754944e-38, %v1897
        %v1899 = vsel %vm1896, %v1898, %v1894
        %v1900 = vrcp.pop %v1879
        %v1901 = vmul.f32 %v1879, %v1900
        %v1902 = vsub.f32 1.0, %v1901
        %v1903 = vmul.f32 %v1900, %v1902
        %v1904 = vadd.f32 %v1900, %v1903
        %vm1905 = vweird.f32 %v1879
        %vm1906 = vweird.f32 %v1900
        %vm1907 = vmor %vm1905, %vm1906
        %v1908 = vsel %vm1907, %v1900, %v1904
        %v1909 = vand.u32 2147483647, %v1879
        %vm1910 = vcmp.eq.f32.partialorder %v1909, 8.507059e+37
        %v1911 = vand.u32 %v1879, 2147483648
        %v1912 = vor.u32 1.1754944e-38, %v1911
        %v1913 = vsel %vm1910, %v1912, %v1908
        %v1914 = vrcp.pop %v1882
        %v1915 = vmul.f32 %v1882, %v1914
        %v1916 = vsub.f32 1.0, %v1915
        %v1917 = vmul.f32 %v1914, %v1916
        %v1918 = vadd.f32 %v1914, %v1917
        %vm1919 = vweird.f32 %v1882
        %vm1920 = vweird.f32 %v1914
        %vm1921 = vmor %vm1919, %vm1920
        %v1922 = vsel %vm1921, %v1914, %v1918
        %v1923 = vand.u32 2147483647, %v1882
        %vm1924 = vcmp.eq.f32.partialorder %v1923, 8.507059e+37
        %v1925 = vand.u32 %v1882, 2147483648
        %v1926 = vor.u32 1.1754944e-38, %v1925
        %v1927 = vsel %vm1924, %v1926, %v1922
        %v1928 = vrcp.pop %v1885
        %v1929 = vmul.f32 %v1885, %v1928
        %v1930 = vsub.f32 1.0, %v1929
        %v1931 = vmul.f32 %v1928, %v1930
        %v1932 = vadd.f32 %v1928, %v1931
        %vm1933 = vweird.f32 %v1885
        %vm1934 = vweird.f32 %v1928
        %vm1935 = vmor %vm1933, %vm1934
        %v1936 = vsel %vm1935, %v1928, %v1932
        %v1937 = vand.u32 2147483647, %v1885
        %vm1938 = vcmp.eq.f32.partialorder %v1937, 8.507059e+37
        %v1939 = vand.u32 %v1885, 2147483648
        %v1940 = vor.u32 1.1754944e-38, %v1939
        %v1941 = vsel %vm1938, %v1940, %v1936
        %v1942 = vmul.f32 %v1867, %v1899
        %v1943 = vmul.f32 %v1869, %v1913
        %v1944 = vmul.f32 %v1871, %v1927
        %v1945 = vmul.f32 %v1873, %v1941
        %v1947 = vsel %vm1849, %v1942, 0
        %1949 = vmatpush.msra.mxu0 0.0
        %1950 = vmatpush.msra.mxu0 0.0
        %1951 = vmatpush.msra.mxu0 0.0
        %1952 = vmatpush.msra.mxu0 0.0
        %1953 = vmatpush.msra.mxu0 0.0
        %1954 = vmatpush.msra.mxu0 0.0
        %1955 = vmatpush.msra.mxu0 0.0
        %1956 = vmatpush.msra.mxu0 0.0
        %1957 = vmatpush.msra.mxu0 0.0
        %1958 = vmatpush.msra.mxu0 0.0
        %1959 = vmatpush.msra.mxu0 0.0
        %1960 = vmatpush.msra.mxu0 0.0
        %1961 = vmatpush.msra.mxu0 0.0
        %1962 = vmatpush.msra.mxu0 0.0
        %1963 = vmatpush.msra.mxu0 0.0
        %1964 = vmatpush.msra.mxu0 %v1734
        %1965 = vmatmul.f32.gmra.mxu0 %v1947
        %v1966 = vpop.f32.mrf.mxu0
        %v1967 = vadd.f32 0.0, %v1966
        %1968 = vdwg.mxu0
        %v1970 = vsel %vm1849, %v1943, 0
        %1972 = vmatpush.msra.mxu0 0.0
        %1973 = vmatpush.msra.mxu0 0.0
        %1974 = vmatpush.msra.mxu0 0.0
        %1975 = vmatpush.msra.mxu0 0.0
        %1976 = vmatpush.msra.mxu0 0.0
        %1977 = vmatpush.msra.mxu0 0.0
        %1978 = vmatpush.msra.mxu0 0.0
        %1979 = vmatpush.msra.mxu0 0.0
        %1980 = vmatpush.msra.mxu0 0.0
        %1981 = vmatpush.msra.mxu0 0.0
        %1982 = vmatpush.msra.mxu0 0.0
        %1983 = vmatpush.msra.mxu0 0.0
        %1984 = vmatpush.msra.mxu0 0.0
        %1985 = vmatpush.msra.mxu0 0.0
        %1986 = vmatpush.msra.mxu0 0.0
        %1987 = vmatpush.msra.mxu0 %v1737
        %1988 = vmatmul.f32.gmra.mxu0 %v1970
        %v1989 = vpop.f32.mrf.mxu0
        %v1990 = vadd.f32 0.0, %v1989
        %1991 = vdwg.mxu0
        %v1993 = vsel %vm1849, %v1944, 0
        %1995 = vmatpush.msra.mxu0 0.0
        %1996 = vmatpush.msra.mxu0 0.0
        %1997 = vmatpush.msra.mxu0 0.0
        %1998 = vmatpush.msra.mxu0 0.0
        %1999 = vmatpush.msra.mxu0 0.0
        %2000 = vmatpush.msra.mxu0 0.0
        %2001 = vmatpush.msra.mxu0 0.0
        %2002 = vmatpush.msra.mxu0 0.0
        %2003 = vmatpush.msra.mxu0 0.0
        %2004 = vmatpush.msra.mxu0 0.0
        %2005 = vmatpush.msra.mxu0 0.0
        %2006 = vmatpush.msra.mxu0 0.0
        %2007 = vmatpush.msra.mxu0 0.0
        %2008 = vmatpush.msra.mxu0 0.0
        %2009 = vmatpush.msra.mxu0 0.0
        %2010 = vmatpush.msra.mxu0 %v1740
        %2011 = vmatmul.f32.gmra.mxu0 %v1993
        %v2012 = vpop.f32.mrf.mxu0
        %v2013 = vadd.f32 0.0, %v2012
        %2014 = vdwg.mxu0
        %v2016 = vsel %vm1849, %v1945, 0
        %2018 = vmatpush.msra.mxu0 0.0
        %2019 = vmatpush.msra.mxu0 0.0
        %2020 = vmatpush.msra.mxu0 0.0
        %2021 = vmatpush.msra.mxu0 0.0
        %2022 = vmatpush.msra.mxu0 0.0
        %2023 = vmatpush.msra.mxu0 0.0
        %2024 = vmatpush.msra.mxu0 0.0
        %2025 = vmatpush.msra.mxu0 0.0
        %2026 = vmatpush.msra.mxu0 0.0
        %2027 = vmatpush.msra.mxu0 0.0
        %2028 = vmatpush.msra.mxu0 0.0
        %2029 = vmatpush.msra.mxu0 0.0
        %2030 = vmatpush.msra.mxu0 0.0
        %2031 = vmatpush.msra.mxu0 0.0
        %2032 = vmatpush.msra.mxu0 0.0
        %2033 = vmatpush.msra.mxu0 %v1743
        %2034 = vmatmul.f32.gmra.mxu0 %v2016
        %v2035 = vpop.f32.mrf.mxu0
        %v2036 = vadd.f32 0.0, %v2035
        %2037 = vdwg.mxu0
        %v2038 = vld [vmem:[%s11] sm:$0xff]
        %v2039 = vld [vmem:[%s11 + $0x8] sm:$0xff]
        %v2040 = vld [vmem:[%s11 + $0x10] sm:$0xff]
        %v2041 = vld [vmem:[%s11 + $0x18] sm:$0xff]
        %v2042 = vld [vmem:[%s11 + $0x20] sm:$0xff]
        %v2043 = vld [vmem:[%s11 + $0x28] sm:$0xff]
        %v2044 = vld [vmem:[%s11 + $0x30] sm:$0xff]
        %v2045 = vld [vmem:[%s11 + $0x38] sm:$0xff]
        %v2046 = vld [vmem:[#allocation7 + $0xf] sm:$0x1]
        %v2047 = vperm.slane %v2046, 0
        %v2049 = vsel %vm1137, %v1967, 0
        %v2052 = vsel %vm1137, %v1990, 0
        %v2055 = vsel %vm1137, %v2013, 0
        %v2058 = vsel %vm1137, %v2036, 0
        %2060 = vmatpush.msra.mxu0 0.0
        %2061 = vmatpush.msra.mxu0 0.0
        %2062 = vmatpush.msra.mxu0 0.0
        %2063 = vmatpush.msra.mxu0 0.0
        %2064 = vmatpush.msra.mxu0 0.0
        %2065 = vmatpush.msra.mxu0 0.0
        %2066 = vmatpush.msra.mxu0 0.0
        %2067 = vmatpush.msra.mxu0 0.0
        %2068 = vmatpush.msra.mxu0 %v2045
        %2069 = vmatpush.msra.mxu0 %v2044
        %2070 = vmatpush.msra.mxu0 %v2043
        %2071 = vmatpush.msra.mxu0 %v2042
        %2072 = vmatpush.msra.mxu0 %v2041
        %2073 = vmatpush.msra.mxu0 %v2040
        %2074 = vmatpush.msra.mxu0 %v2039
        %2075 = vmatpush.msra.mxu0 %v2038
        %2076 = vmatmul.f32.gmra.mxu0 %v2049
        %v2077 = vpop.f32.mrf.mxu0
        %v2078 = vadd.f32 %v2047, %v2077
        %2079 = vmatmul.f32.gmra.mxu0 %v2052
        %v2080 = vpop.f32.mrf.mxu0
        %v2081 = vadd.f32 %v2047, %v2080
        %2082 = vmatmul.f32.gmra.mxu0 %v2055
        %v2083 = vpop.f32.mrf.mxu0
        %v2084 = vadd.f32 %v2047, %v2083
        %2085 = vmatmul.f32.gmra.mxu0 %v2058
        %v2086 = vpop.f32.mrf.mxu0
        %v2087 = vadd.f32 %v2047, %v2086
        %2088 = vdwg.mxu0
        %v2089 = vadd.f32 %v1483, %v2078
        %v2090 = vadd.f32 %v1486, %v2081
        %v2091 = vadd.f32 %v1489, %v2084
        %v2092 = vadd.f32 %v1492, %v2087
        %v2093 = vadd.f32 %v2089, %v646
        %v2094 = vadd.f32 %v2090, %v647
        %v2095 = vadd.f32 %v2091, %v648
        %v2096 = vadd.f32 %v2092, %v649
        %v2097 = vld [vmem:[#allocation7 + $0x10] sm:$0x1]
        %v2098 = vld [vmem:[#allocation7 + $0x11] sm:$0x1]
        %v2099 = vsel %vm664, %v2093, 0.0
        %2100 = vadd.xlane.f32.xlu0 %v2099
        %v2101 = vpop.xlane.xlu0 %2100
        %v2102 = vsel %vm664, %v2094, 0.0
        %2103 = vadd.xlane.f32.xlu0 %v2102
        %v2104 = vpop.xlane.xlu0 %2103
        %v2105 = vsel %vm664, %v2095, 0.0
        %2106 = vadd.xlane.f32.xlu0 %v2105
        %v2107 = vpop.xlane.xlu0 %2106
        %v2108 = vsel %vm664, %v2096, 0.0
        %2109 = vadd.xlane.f32.xlu0 %v2108
        %v2110 = vpop.xlane.xlu0 %2109
        %v2111 = vmul.f32 %v2101, %v683
        %v2112 = vmul.f32 %v2104, %v683
        %v2113 = vmul.f32 %v2107, %v683
        %v2114 = vmul.f32 %v2110, %v683
        %v2115 = vsub.f32 %v2093, %v2111
        %v2116 = vsub.f32 %v2094, %v2112
        %v2117 = vsub.f32 %v2095, %v2113
        %v2118 = vsub.f32 %v2096, %v2114
        %v2119 = vmul.f32 %v2115, %v2115
        %v2120 = vmul.f32 %v2116, %v2116
        %v2121 = vmul.f32 %v2117, %v2117
        %v2122 = vmul.f32 %v2118, %v2118
        %v2123 = vsel %vm664, %v2119, 0.0
        %2124 = vadd.xlane.f32.xlu0 %v2123
        %v2125 = vpop.xlane.xlu0 %2124
        %v2126 = vsel %vm664, %v2120, 0.0
        %2127 = vadd.xlane.f32.xlu0 %v2126
        %v2128 = vpop.xlane.xlu0 %2127
        %v2129 = vsel %vm664, %v2121, 0.0
        %2130 = vadd.xlane.f32.xlu0 %v2129
        %v2131 = vpop.xlane.xlu0 %2130
        %v2132 = vsel %vm664, %v2122, 0.0
        %2133 = vadd.xlane.f32.xlu0 %v2132
        %v2134 = vpop.xlane.xlu0 %2133
        %v2135 = vmul.f32 %v2125, %v683
        %v2136 = vmul.f32 %v2128, %v683
        %v2137 = vmul.f32 %v2131, %v683
        %v2138 = vmul.f32 %v2134, %v683
        %v2139 = vadd.f32 %v2135, 1e-05
        %v2140 = vadd.f32 %v2136, 1e-05
        %v2141 = vadd.f32 %v2137, 1e-05
        %v2142 = vadd.f32 %v2138, 1e-05
        %v2143 = vrsqrt.pop %v2139
        %v2144 = vmul.f32 %v2143, %v2139
        %v2145 = vmul.f32 %v2144, %v2143
        %v2146 = vmul.f32 0.5, %v2145
        %v2147 = vsub.f32 1.5, %v2146
        %v2148 = vmul.f32 %v2143, %v2147
        %vm2149 = vweird.f32 %v2139
        %vm2150 = vweird.f32 %v2143
        %vm2151 = vmor %vm2149, %vm2150
        %v2152 = vsel %vm2151, %v2143, %v2148
        %v2153 = vrsqrt.pop %v2140
        %v2154 = vmul.f32 %v2153, %v2140
        %v2155 = vmul.f32 %v2154, %v2153
        %v2156 = vmul.f32 0.5, %v2155
        %v2157 = vsub.f32 1.5, %v2156
        %v2158 = vmul.f32 %v2153, %v2157
        %vm2159 = vweird.f32 %v2140
        %vm2160 = vweird.f32 %v2153
        %vm2161 = vmor %vm2159, %vm2160
        %v2162 = vsel %vm2161, %v2153, %v2158
        %v2163 = vrsqrt.pop %v2141
        %v2164 = vmul.f32 %v2163, %v2141
        %v2165 = vmul.f32 %v2164, %v2163
        %v2166 = vmul.f32 0.5, %v2165
        %v2167 = vsub.f32 1.5, %v2166
        %v2168 = vmul.f32 %v2163, %v2167
        %vm2169 = vweird.f32 %v2141
        %vm2170 = vweird.f32 %v2163
        %vm2171 = vmor %vm2169, %vm2170
        %v2172 = vsel %vm2171, %v2163, %v2168
        %v2173 = vrsqrt.pop %v2142
        %v2174 = vmul.f32 %v2173, %v2142
        %v2175 = vmul.f32 %v2174, %v2173
        %v2176 = vmul.f32 0.5, %v2175
        %v2177 = vsub.f32 1.5, %v2176
        %v2178 = vmul.f32 %v2173, %v2177
        %vm2179 = vweird.f32 %v2142
        %vm2180 = vweird.f32 %v2173
        %vm2181 = vmor %vm2179, %vm2180
        %v2182 = vsel %vm2181, %v2173, %v2178
        %v2183 = vmul.f32 %v2115, %v2152
        %v2184 = vmul.f32 %v2116, %v2162
        %v2185 = vmul.f32 %v2117, %v2172
        %v2186 = vmul.f32 %v2118, %v2182
        %v2187 = vperm.slane %v2097, 0
        %v2188 = vmul.f32 %v2183, %v2187
        %v2189 = vmul.f32 %v2184, %v2187
        %v2190 = vmul.f32 %v2185, %v2187
        %v2191 = vmul.f32 %v2186, %v2187
        %v2192 = vperm.slane %v2098, 0
        %v2193 = vadd.f32 %v2188, %v2192
        %v2194 = vadd.f32 %v2189, %v2192
        %v2195 = vadd.f32 %v2190, %v2192
        %v2196 = vadd.f32 %v2191, %v2192
        %v2197 = vld [vmem:[#allocation16] sm:$0xff]
        %v2198 = vld [vmem:[#allocation16 + $0x8] sm:$0xff]
        %v2199 = vld [vmem:[#allocation16 + $0x10] sm:$0xff]
        %v2200 = vld [vmem:[#allocation16 + $0x18] sm:$0xff]
        %v2201 = vld [vmem:[#allocation7 + $0x12] sm:$0x1]
        %v2202 = vperm.slane %v2201, 0
        %v2204 = vsel %vm664, %v2193, 0
        %v2207 = vsel %vm664, %v2194, 0
        %v2210 = vsel %vm664, %v2195, 0
        %v2213 = vsel %vm664, %v2196, 0
        %2215 = vmatpush.msra.mxu0 0.0
        %2216 = vmatpush.msra.mxu0 0.0
        %2217 = vmatpush.msra.mxu0 0.0
        %2218 = vmatpush.msra.mxu0 0.0
        %2219 = vmatpush.msra.mxu0 0.0
        %2220 = vmatpush.msra.mxu0 0.0
        %2221 = vmatpush.msra.mxu0 0.0
        %2222 = vmatpush.msra.mxu0 0.0
        %2223 = vmatpush.msra.mxu0 0.0
        %2224 = vmatpush.msra.mxu0 0.0
        %2225 = vmatpush.msra.mxu0 0.0
        %2226 = vmatpush.msra.mxu0 0.0
        %2227 = vmatpush.msra.mxu0 %v2200
        %2228 = vmatpush.msra.mxu0 %v2199
        %2229 = vmatpush.msra.mxu0 %v2198
        %2230 = vmatpush.msra.mxu0 %v2197
        %2231 = vmatmul.f32.gmra.mxu0 %v2204
        %v2232 = vpop.f32.mrf.mxu0
        %v2233 = vadd.f32 %v2202, %v2232
        %2234 = vmatmul.f32.gmra.mxu0 %v2207
        %v2235 = vpop.f32.mrf.mxu0
        %v2236 = vadd.f32 %v2202, %v2235
        %2237 = vmatmul.f32.gmra.mxu0 %v2210
        %v2238 = vpop.f32.mrf.mxu0
        %v2239 = vadd.f32 %v2202, %v2238
        %2240 = vmatmul.f32.gmra.mxu0 %v2213
        %v2241 = vpop.f32.mrf.mxu0
        %v2242 = vadd.f32 %v2202, %v2241
        %2243 = vdwg.mxu0
        %v2244 = vadd.f32 %v2233, %v2093
        %v2245 = vadd.f32 %v2236, %v2094
        %v2246 = vadd.f32 %v2239, %v2095
        %v2247 = vadd.f32 %v2242, %v2096
        %2248 = vst.msk [vmem:[%s635] sm:$0xff] %vm664, %v2244
        %2249 = vst.msk [vmem:[%s635 + $0x8] sm:$0xff] %vm664, %v2245
        %2250 = vst.msk [vmem:[%s635 + $0x10] sm:$0xff] %vm664, %v2246
        %2251 = vst.msk [vmem:[%s635 + $0x18] sm:$0xff] %vm664, %v2247
        %s2252 = sand.u32 %s332, 1
        %s2253 = scalar_lea.sflag [#allocation4], %s2252
        %s2254 = sand.u32 %s332, 1
        %s2255 = smul.addr %s2254, 32
        %s2256 = scalar_lea.vmem [#allocation17], %s2255
        // Predicated region
        $region109: #{tpu_custom_call.1} parent=71 // pred_check
          %p2257 = pneg %p342
        $region110: #{tpu_custom_call.1} parent=71 // pred_check_branch
          %2259 = sbr.rel (%p2257) target = $region112
        $region111: #{tpu_custom_call.1} parent=71 // pred_region
          %s2260 = smul.u32 4, %s36
          %2262 = vsyncadd %s2253, 0
          %s2263 = smul.addr %s2260, 8
          %s2264 = scalar_lea.hbm %s13, %s2263
          %s2265 = sshll.u32 %s2256, 4
          %s2266 = int_to_ptr.vmem [resolvable:$true] %s2265
          %s2267 = sshll.u32 %s2264, 4
          %s2268 = int_to_ptr.hbm [resolvable:$true] %s2267
          %2273 = dma.vmem_to_hbm [thread:$0]  %s2266, 512, %s2268, %s2253, 128, 128, 8
        $region112: #{tpu_custom_call.1} parent=71 // pred_fallthru
          _
      $region72: #{tpu_custom_call.1} parent=5 // pred_fallthru
        _
      %p2274 = scmp.le.s32.totalorder 2, %s31
      // Predicated region
      $region113: #{tpu_custom_call.1} parent=5 // pred_check
        %p2275 = pneg %p2274
      $region114: #{tpu_custom_call.1} parent=5 // pred_check_branch
        %2277 = sbr.rel (%p2275) target = $region116
      $region115: #{tpu_custom_call.1} parent=5 // pred_region
        %s2278 = ssub.s32 %s31, 2
        // Predicated region
        $region117: #{tpu_custom_call.1} parent=115 // pred_check
          %p2279 = pneg %p348
        $region118: #{tpu_custom_call.1} parent=115 // pred_check_branch
          %2281 = sbr.rel (%p2279) target = $region120
        $region119: #{tpu_custom_call.1} parent=115 // pred_region
          %s2282 = sand.u32 %s333, 1
          %s2283 = scalar_lea.sflag [#allocation4], %s2282
          %s2284 = sand.u32 %s333, 1
          %s2285 = smul.addr %s2284, 32
          %s2286 = scalar_lea.vmem [#allocation17], %s2285
          %2288 = dma.done %s2283, 512
        $region120: #{tpu_custom_call.1} parent=115 // pred_fallthru
          _
      $region116: #{tpu_custom_call.1} parent=5 // pred_fallthru
        _
    $region6: #{tpu_custom_call.1} parent=1 // loop_footer
      %s35 = sadd.s32 1, %s31
    $region7: #{tpu_custom_call.1} parent=1 // loop_footer_branch
      %30 = sbr.rel target = $region3
    $region8: #{tpu_custom_call.1} parent=1 // loop_exit
      _
    %2289 = vsyncpa [#allocation3], 1
    %s2290 = scalar_lea.sflag [#allocation3], 1
    %2291 = vsyncpa %s2290, 1
    %2292 = vsyncpa [#allocation6], 1
    %s2293 = scalar_lea.sflag [#allocation6], 1
    %2294 = vsyncpa %s2293, 1
    %2295 = vsyncpa [#allocation9], 1
    %2296 = vsyncpa [#allocation12], 1
    %2297 = vsyncpa [#allocation15], 1
    %2298 = vsyncpa [#allocation4], 1
    %s2299 = scalar_lea.sflag [#allocation4], 1
    %2300 = vsyncpa %s2299, 1

</llo_original>
